<compile_context>
chip_gen: v6e
topology: v6e:2x2x1
jax: 0.10.0
libtpu: 0.0.40
codegen_flags: <defaults>
</compile_context>

<pallas_src>
import functools
import math

import jax
import jax.numpy as jnp
from jax.experimental import pallas as pl
from jax.experimental.pallas import tpu as pltpu

NEG_SLOPE = 0.1  # LeakyReLU negative slope (module default activation)
VMEM_LIMIT = 48 * 1024 * 1024
ROW_TILE_VMEM_BUDGET = 24 * 1024 * 1024


def _lrelu(x):
    return jnp.where(x > 0, x, NEG_SLOPE * x)


def _round_up(x, m):
    return ((x + m - 1) // m) * m


def _space_to_depth2(x):
    """(N, 2*Hh, 2*Wh, C) -> (N, Hh, Wh, 4*C); out channel (2*py+px)*C + c."""
    N, Hp, Wp, C = x.shape
    x = x.reshape(N, Hp // 2, 2, Wp // 2, 2, C)
    x = jnp.transpose(x, (0, 1, 3, 2, 4, 5))
    return x.reshape(N, Hp // 2, Wp // 2, 4 * C)


def _expand_merged_conv3x3_weights(w_image, w_depth):
    """Block-diagonal (image | depth) 3x3 weights -> (16*Ct, Fi+Fd) im2col rows.

    Row index = dy*8*Ct + dx*4*Ct + (2*py+px)*Ct + c ; taps with ky or kx == 3
    get zero rows (phantom taps of the stride-2 space-to-depth factorization).
    """
    Ci, Fi = w_image.shape[2], w_image.shape[3]
    Cd3, Fd = w_depth.shape[2], w_depth.shape[3]
    Ct = Ci + Cd3
    w_full = jnp.zeros((3, 3, Ct, Fi + Fd), w_image.dtype)
    w_full = w_full.at[:, :, :Ci, :Fi].set(w_image)
    w_full = w_full.at[:, :, Ci:, Fi:].set(w_depth)
    zero = jnp.zeros((Ct, Fi + Fd), w_image.dtype)
    rows = []
    for dy in range(2):
        for dx in range(2):
            for py in range(2):
                for px in range(2):
                    ky, kx = 2 * dy + py, 2 * dx + px
                    rows.append(w_full[ky, kx] if (ky < 3 and kx < 3) else zero)
    return jnp.concatenate(rows, axis=0)  # (16*Ct, Fi+Fd)


def _row_tile_cap(Wo, Ct, budget_bytes=ROW_TILE_VMEM_BUDGET):
    """Max output rows per tile for a given VMEM budget (conservative f32 est.)."""
    lanes = (max(128, 8 * Ct) * 4      # double-buffered input rows (lane-padded)
             + 16 * Ct * 2             # patch + flattened copy
             + 64 + 64                 # f32 acc + channel-major transpose
             + 64 * 2)                 # double-buffered outputs
    per_row = 4 * Wo * lanes
    return max(8, min(256, budget_bytes // per_row))


def _choose_row_tile(Ho, Wo, cap):
    """Pick th (output rows / tile) and padded Ho so th*Wo is lane-aligned."""
    cap = max(1, min(cap, Ho))
    if Ho <= cap:
        return Ho, Ho                                     # single row tile
    granule = 128 // math.gcd(Wo, 128)                    # th % granule == 0 -> th*Wo % 128 == 0
    best = 0
    for t in range(cap, 0, -1):
        if Ho % t == 0 and t % granule == 0:
            best = t
            break
    if best and best * 2 >= cap:
        return best, Ho                                   # exact tiling, no padding
    th = max(granule, (cap // granule) * granule)         # padded last tile
    return th, pl.cdiv(Ho, th) * th


# --------------------------------------------------------------------------- #
# Kernel 1: merged image+depth stride-2 3x3 conv (single K=16*Ct MXU matmul),
#           LeakyReLU, channel-major stores for both branch outputs.
# --------------------------------------------------------------------------- #
def _merged_conv3x3_s2_kernel(main_ref, halo_ref, w_ref, o_img_ref, o_dep_ref):
    # main_ref: (1, th, Wo, 8*Ct) x-im2col rows i*th .. i*th+th-1   (dy = 0 taps)
    # halo_ref: (1, 1,  Wo, 8*Ct) x-im2col row  i*th+th             (halo)
    # w_ref   : (16*Ct, Fi+Fd)    expanded block-diagonal weights
    # o_*_ref : (1, F*, th*Wo)    channel-major flat output row-tiles
    th, Wo = main_ref.shape[1], main_ref.shape[2]
    C8 = main_ref.shape[3]
    Fi = o_img_ref.shape[1]

    main = main_ref[0]                                   # (th, Wo, 8*Ct)
    halo = halo_ref[0]                                   # (1,  Wo, 8*Ct)
    if th > 1:
        bot = jnp.concatenate([main[1:], halo], axis=0)  # dy = 1 taps (row shift)
    else:
        bot = halo
    patch = jnp.concatenate([main, bot], axis=-1)        # (th, Wo, 16*Ct)
    patch = patch.reshape(th * Wo, 2 * C8)

    acc = jnp.dot(patch, w_ref[...], preferred_element_type=jnp.float32)
    acc = _lrelu(acc).astype(o_img_ref.dtype)            # (th*Wo, Fi+Fd)
    acc_t = acc.T                                        # XLU transpose -> channel-major
    o_img_ref[0] = acc_t[:Fi]
    o_dep_ref[0] = acc_t[Fi:]


def _merged_conv3x3_s2(merged_nchw, w_image, w_depth):
    """Both stride-2 3x3 branches in one pallas_call. Returns NCHW outputs."""
    N, Ct, H, W = merged_nchw.shape
    assert H % 2 == 0 and W % 2 == 0, "even spatial dims required"
    Fi, Fd = w_image.shape[-1], w_depth.shape[-1]
    Ho, Wo = H // 2, W // 2

    # One layout pass: NCHW -> NHWC -> pad -> space-to-depth -> x-direction im2col.
    x = jnp.transpose(merged_nchw, (0, 2, 3, 1))
    x = jnp.pad(x, ((0, 0), (1, 1), (1, 1), (0, 0)))
    x = _space_to_depth2(x)                                            # (N, Ho+1, Wo+1, 4*Ct)
    x = jnp.concatenate([x[:, :, :-1, :], x[:, :, 1:, :]], axis=-1)    # (N, Ho+1, Wo, 8*Ct)

    th, Ho_pad = _choose_row_tile(Ho, Wo, _row_tile_cap(Wo, Ct))
    if Ho_pad > Ho:
        x = jnp.pad(x, ((0, 0), (0, Ho_pad - Ho), (0, 0), (0, 0)))     # rows = Ho_pad + 1
    n_row = Ho_pad // th

    w_big = _expand_merged_conv3x3_weights(w_image, w_depth)           # (16*Ct, Fi+Fd)

    out_img, out_dep = pl.pallas_call(
        _merged_conv3x3_s2_kernel,
        out_shape=(jax.ShapeDtypeStruct((N, Fi, Ho_pad * Wo), merged_nchw.dtype),
                   jax.ShapeDtypeStruct((N, Fd, Ho_pad * Wo), merged_nchw.dtype)),
        grid=(N, n_row),
        in_specs=[
            pl.BlockSpec((1, th, Wo, 8 * Ct), lambda n, i: (n, i, 0, 0)),
            # same array again: one extra halo row per tile (block size 1 => element index)
            pl.BlockSpec((1, 1, Wo, 8 * Ct), lambda n, i: (n, (i + 1) * th, 0, 0)),
            pl.BlockSpec((16 * Ct, Fi + Fd), lambda n, i: (0, 0)),
        ],
        out_specs=(pl.BlockSpec((1, Fi, th * Wo), lambda n, i: (n, 0, i)),
                   pl.BlockSpec((1, Fd, th * Wo), lambda n, i: (n, 0, i))),
        compiler_params=pltpu.CompilerParams(
            dimension_semantics=("parallel", "parallel"),
            vmem_limit_bytes=VMEM_LIMIT),
    )(x, x, w_big)

    def finish(o, C):
        if Ho_pad > Ho:
            o = o[:, :, :Ho * Wo]
        return o.reshape(N, C, Ho, Wo)

    return finish(out_img, Fi), finish(out_dep, Fd)


# --------------------------------------------------------------------------- #
# Kernel 2: fused proj_depth -> xyz -> 1x1 stride-2 conv, channel-major.
# --------------------------------------------------------------------------- #
def _fused_pointwise_kernel(ci, cd, x_ref, wp_ref, wm_ref, wx_ref, o_ref):
    # x_ref : (1, Ctot, tm) even-pixel slab, channels [img, dep, coo, (fus)]
    # wp_ref: (Cd, 1)       proj_depth weight (lane-broadcast)
    # wm_ref: (Cout, Ctot)  fused-conv weight, zero columns at dep/coo channels
    # wx_ref: (Cout, 3)     fused-conv weight rows for the xyz channels
    x = x_ref[0]                                                     # (Ctot, tm)
    dep = x[ci:ci + cd, :]
    coo = x[ci + cd:ci + cd + 3, :]
    z = _lrelu(jnp.sum(dep * wp_ref[...], axis=0, keepdims=True))    # (1, tm)  VPU/XLU only
    xyz = coo * z                                                    # (3, tm)
    acc = jnp.dot(wm_ref[...], x, preferred_element_type=jnp.float32)
    acc = acc + jnp.dot(wx_ref[...], xyz, preferred_element_type=jnp.float32)
    o_ref[0] = _lrelu(acc).astype(o_ref.dtype)


def _fused_pointwise(pw, wp, wm, wx, ci, cd, tm_cap=8192):
    """pw: (N, Ctot, M) channel-major even-pixel slab -> (N, Cout, M) (NCHW-flat)."""
    N, Ctot, M = pw.shape
    Cout = wm.shape[0]
    tm = min(tm_cap, _round_up(M, 512))
    Mp = _round_up(M, tm)
    if Mp > M:
        pw = jnp.pad(pw, ((0, 0), (0, 0), (0, Mp - M)))

    out = pl.pallas_call(
        functools.partial(_fused_pointwise_kernel, ci, cd),
        out_shape=jax.ShapeDtypeStruct((N, Cout, Mp), pw.dtype),
        grid=(N, Mp // tm),
        in_specs=[
            pl.BlockSpec((1, Ctot, tm), lambda n, i: (n, 0, i)),
            pl.BlockSpec((cd, 1), lambda n, i: (0, 0)),
            pl.BlockSpec((Cout, Ctot), lambda n, i: (0, 0)),
            pl.BlockSpec((Cout, 3), lambda n, i: (0, 0)),
        ],
        out_specs=pl.BlockSpec((1, Cout, tm), lambda n, i: (n, 0, i)),
        compiler_params=pltpu.CompilerParams(
            dimension_semantics=("parallel", "parallel"),
            vmem_limit_bytes=VMEM_LIMIT),
    )(pw, wp, wm, wx)
    return out[:, :, :M] if Mp > M else out


# --------------------------------------------------------------------------- #
# CalibratedBackprojectionBlock forward
# --------------------------------------------------------------------------- #
def init_params(key, in_channels_image, in_channels_depth, in_channels_fused,
                n_filter_image=48, n_filter_depth=16, n_filter_fused=48):
    """Deterministic synthetic weights (HWIO for 3x3 convs, IO for 1x1 convs)."""
    k1, k2, k3, k4 = jax.random.split(key, 4)
    return {
        "w_image": 0.1 * jax.random.normal(
            k1, (3, 3, in_channels_image, n_filter_image), jnp.float32),
        "w_depth": 0.1 * jax.random.normal(
            k2, (3, 3, in_channels_depth + 3, n_filter_depth), jnp.float32),
        "w_proj": 0.1 * jax.random.normal(
            k3, (in_channels_depth, 1), jnp.float32),
        "w_fused": 0.1 * jax.random.normal(
            k4, (in_channels_fused + 3, n_filter_fused), jnp.float32),
    }


def calibrated_backprojection_block(params, image, depth, coordinates, fused=None):
    """image/depth/coordinates[/fused]: NCHW float32 (like the PyTorch module)."""
    N, Ci, H, W = image.shape
    Cd = depth.shape[1]
    Ho, Wo = H // 2, W // 2
    M = Ho * Wo

    # single shared channel concat feeding both the 3x3 kernel and the fused branch
    merged = jnp.concatenate([image, depth, coordinates], axis=1)     # (N, Ci+Cd+3, H, W)

    # image + depth branches: one merged stride-2 3x3 conv kernel (K = 16*Ct)
    conv_image, conv_depth = _merged_conv3x3_s2(
        merged, params["w_image"], params["w_depth"])

    # fused branch: proj_depth -> xyz -> 1x1 stride-2 conv at the even pixels,
    # channel-major so the kernel output is already NCHW-flat.
    pw = merged[:, :, ::2, ::2].reshape(N, Ci + Cd + 3, M)
    w_fused = params["w_fused"]
    Cout = w_fused.shape[1]
    if fused is not None:
        Cf = fused.shape[1]
        pw = jnp.concatenate([pw, fused[:, :, ::2, ::2].reshape(N, Cf, M)], axis=1)
    else:
        Cf = 0
    Ctot = Ci + Cd + 3 + Cf
    wm = jnp.zeros((Cout, Ctot), w_fused.dtype)
    wm = wm.at[:, :Ci].set(w_fused[:Ci].T)
    if Cf:
        wm = wm.at[:, Ci + Cd + 3:].set(w_fused[Ci + 3:].T)
    wx = jnp.transpose(w_fused[Ci:Ci + 3])                            # (Cout, 3)

    conv_fused = _fused_pointwise(pw, params["w_proj"], wm, wx, Ci, Cd)
    conv_fused = conv_fused.reshape(N, Cout, Ho, Wo)

    return conv_image, conv_depth, conv_fused


# --------------------------------------------------------------------------- #
# Pure-JAX reference (mirrors the PyTorch module exactly)
# --------------------------------------------------------------------------- #
def _reference(params, image, depth, coordinates, fused=None):
    dn = ("NCHW", "HWIO", "NCHW")
    conv = lambda x, w, s, p: jax.lax.conv_general_dilated(
        x, w, (s, s), ((p, p), (p, p)), dimension_numbers=dn,
        precision=jax.lax.Precision.HIGHEST)
    conv_image = _lrelu(conv(image, params["w_image"], 2, 1))
    conv_depth = _lrelu(conv(jnp.concatenate([depth, coordinates], axis=1),
                             params["w_depth"], 2, 1))
    Cd = depth.shape[1]
    z = _lrelu(conv(depth, params["w_proj"].reshape(1, 1, Cd, 1), 1, 0))
    xyz = coordinates * z
    layers = [image, xyz] + ([fused] if fused is not None else [])
    wf = params["w_fused"]
    conv_fused = _lrelu(conv(jnp.concatenate(layers, axis=1),
                             wf.reshape(1, 1, *wf.shape), 2, 0))
    return conv_image, conv_depth, conv_fused


if __name__ == "__main__":
    key = jax.random.PRNGKey(0)
    kp, ki, kd, kc = jax.random.split(key, 4)

    N, H, W = 2, 16, 16
    in_channels_image = 3
    in_channels_depth = 2
    in_channels_fused = in_channels_image   # required when fused=None

    params = init_params(kp, in_channels_image, in_channels_depth, in_channels_fused)

    image = jax.random.normal(ki, (N, in_channels_image, H, W), jnp.float32)
    depth = jax.random.normal(kd, (N, in_channels_depth, H, W), jnp.float32)
    coordinates = jax.random.normal(kc, (N, 3, H, W), jnp.float32)

    fwd = jax.jit(functools.partial(calibrated_backprojection_block, params))
    conv_image, conv_depth, conv_fused = jax.block_until_ready(
        fwd(image, depth, coordinates))

    assert conv_image.shape == (N, 48, H // 2, W // 2), conv_image.shape
    assert conv_depth.shape == (N, 16, H // 2, W // 2), conv_depth.shape
    assert conv_fused.shape == (N, 48, H // 2, W // 2), conv_fused.shape
    assert all(bool(jnp.isfinite(x).all())
               for x in (conv_image, conv_depth, conv_fused))

    # numerical check against the XLA reference of the PyTorch module
    ref_image, ref_depth, ref_fused = _reference(params, image, depth, coordinates)
    for got, ref in ((conv_image, ref_image),
                     (conv_depth, ref_depth),
                     (conv_fused, ref_fused)):
        err = float(jnp.max(jnp.abs(got - ref)))
        assert bool(jnp.allclose(got, ref, atol=2e-2, rtol=2e-2)), err

    print("KERNEL_OK")
</pallas_src>

<mosaic_0001>
module attributes {stable_mosaic.version = 11 : i64} {
  func.func @_fused_pointwise_kernel(%arg0: i32, %arg1: i32, %arg2: memref<1x8x512xf32, #tpu.memory_space<vmem>>, %arg3: memref<2x1xf32, #tpu.memory_space<vmem>>, %arg4: memref<48x8xf32, #tpu.memory_space<vmem>>, %arg5: memref<48x3xf32, #tpu.memory_space<vmem>>, %arg6: memref<1x48x512xf32, #tpu.memory_space<vmem>>) attributes {dimension_semantics = [#tpu.dimension_semantics<parallel>, #tpu.dimension_semantics<parallel>], iteration_bounds = array<i64: 2, 1>, scalar_prefetch = 0 : i64, scratch_operands = 0 : i64, tpu.core_type = #tpu.core_type<tc>, window_params = [{transform_indices = @transform_0, window_bounds = array<i64: 1, 8, 512>}, {pipeline_mode = #tpu.pipeline_mode<synchronous>, transform_indices = @transform_1, window_bounds = array<i64: 2, 1>}, {pipeline_mode = #tpu.pipeline_mode<synchronous>, transform_indices = @transform_2, window_bounds = array<i64: 48, 8>}, {pipeline_mode = #tpu.pipeline_mode<synchronous>, transform_indices = @transform_3, window_bounds = array<i64: 48, 3>}, {transform_indices = @transform_4, window_bounds = array<i64: 1, 48, 512>}]} {
    %c0 = arith.constant 0 : index
    %c0_0 = arith.constant 0 : index
    %c0_1 = arith.constant 0 : index
    %0 = vector.load %arg2[%c0, %c0_0, %c0_1] : memref<1x8x512xf32, #tpu.memory_space<vmem>>, vector<1x8x512xf32>
    %1 = vector.shape_cast %0 : vector<1x8x512xf32> to vector<8x512xf32>
    %2 = vector.extract_strided_slice %1 {offsets = [3, 0], sizes = [2, 512], strides = [1, 1]} : vector<8x512xf32> to vector<2x512xf32>
    %3 = vector.extract_strided_slice %1 {offsets = [5, 0], sizes = [3, 512], strides = [1, 1]} : vector<8x512xf32> to vector<3x512xf32>
    %c0_2 = arith.constant 0 : index
    %c0_3 = arith.constant 0 : index
    %4 = vector.load %arg3[%c0_2, %c0_3] : memref<2x1xf32, #tpu.memory_space<vmem>>, vector<2x1xf32>
    %5 = vector.broadcast %4 : vector<2x1xf32> to vector<2x512xf32>
    %6 = arith.mulf %2, %5 : vector<2x512xf32>
    %cst = arith.constant dense<0.000000e+00> : vector<512xf32>
    %7 = vector.multi_reduction <add>, %6, %cst [0] : vector<2x512xf32> to vector<512xf32>
    %8 = vector.shape_cast %7 : vector<512xf32> to vector<1x512xf32>
    %cst_4 = arith.constant 0.000000e+00 : f32
    %9 = vector.broadcast %cst_4 : f32 to vector<1x512xf32>
    %10 = arith.cmpf ogt, %8, %9 : vector<1x512xf32>
    %cst_5 = arith.constant 1.000000e-01 : f32
    %11 = vector.broadcast %cst_5 : f32 to vector<1x512xf32>
    %12 = arith.mulf %11, %8 : vector<1x512xf32>
    %13 = arith.select %10, %8, %12 : vector<1x512xi1>, vector<1x512xf32>
    %14 = vector.broadcast %13 : vector<1x512xf32> to vector<3x512xf32>
    %15 = arith.mulf %3, %14 : vector<3x512xf32>
    %c0_6 = arith.constant 0 : index
    %c0_7 = arith.constant 0 : index
    %16 = vector.load %arg4[%c0_6, %c0_7] : memref<48x8xf32, #tpu.memory_space<vmem>>, vector<48x8xf32>
    %cst_8 = arith.constant dense<0.000000e+00> : vector<48x512xf32>
    %17 = tpu.matmul %16, %1, %cst_8 {dimension_numbers = #tpu.dot_dimension_numbers<[1], [0], [0], [1], [0, 0, 1, 1], [], []>} : vector<48x8xf32>, vector<8x512xf32>, vector<48x512xf32> -> vector<48x512xf32>
    %c0_9 = arith.constant 0 : index
    %c0_10 = arith.constant 0 : index
    %18 = vector.load %arg5[%c0_9, %c0_10] : memref<48x3xf32, #tpu.memory_space<vmem>>, vector<48x3xf32>
    %cst_11 = arith.constant dense<0.000000e+00> : vector<48x512xf32>
    %19 = tpu.matmul %18, %15, %cst_11 {dimension_numbers = #tpu.dot_dimension_numbers<[1], [0], [0], [1], [0, 0, 1, 1], [], []>} : vector<48x3xf32>, vector<3x512xf32>, vector<48x512xf32> -> vector<48x512xf32>
    %20 = arith.addf %17, %19 : vector<48x512xf32>
    %cst_12 = arith.constant 0.000000e+00 : f32
    %21 = vector.broadcast %cst_12 : f32 to vector<48x512xf32>
    %22 = arith.cmpf ogt, %20, %21 : vector<48x512xf32>
    %cst_13 = arith.constant 1.000000e-01 : f32
    %23 = vector.broadcast %cst_13 : f32 to vector<48x512xf32>
    %24 = arith.mulf %23, %20 : vector<48x512xf32>
    %25 = arith.select %22, %20, %24 : vector<48x512xi1>, vector<48x512xf32>
    %c0_14 = arith.constant 0 : index
    %c0_15 = arith.constant 0 : index
    %c0_16 = arith.constant 0 : index
    %26 = vector.load %arg6[%c0_14, %c0_15, %c0_16] : memref<1x48x512xf32, #tpu.memory_space<vmem>>, vector<1x48x512xf32>
    %27 = vector.shape_cast %26 : vector<1x48x512xf32> to vector<48x512xf32>
    %28 = vector.shape_cast %25 : vector<48x512xf32> to vector<1x48x512xf32>
    tpu.vector_store %arg6[%c0_14, %c0_15, %c0_16], %28 {strides = array<i32>} : memref<1x48x512xf32, #tpu.memory_space<vmem>>, vector<1x48x512xf32>,
    return
  }
  func.func @transform_0(%arg0: i32, %arg1: i32) -> (i32, i32, i32) {
    %c0_i32 = arith.constant 0 : i32
    %c0_i32_0 = arith.constant 0 : i32
    return %arg0, %c0_i32, %arg1 : i32, i32, i32
  }
  func.func @transform_1(%arg0: i32, %arg1: i32) -> (i32, i32) {
    %c0_i32 = arith.constant 0 : i32
    %c0_i32_0 = arith.constant 0 : i32
    %c0_i32_1 = arith.constant 0 : i32
    return %c0_i32, %c0_i32_0 : i32, i32
  }
  func.func @transform_2(%arg0: i32, %arg1: i32) -> (i32, i32) {
    %c0_i32 = arith.constant 0 : i32
    %c0_i32_0 = arith.constant 0 : i32
    %c0_i32_1 = arith.constant 0 : i32
    return %c0_i32, %c0_i32_0 : i32, i32
  }
  func.func @transform_3(%arg0: i32, %arg1: i32) -> (i32, i32) {
    %c0_i32 = arith.constant 0 : i32
    %c0_i32_0 = arith.constant 0 : i32
    %c0_i32_1 = arith.constant 0 : i32
    return %c0_i32, %c0_i32_0 : i32, i32
  }
  func.func @transform_4(%arg0: i32, %arg1: i32) -> (i32, i32, i32) {
    %c0_i32 = arith.constant 0 : i32
    %c0_i32_0 = arith.constant 0 : i32
    return %arg0, %c0_i32, %arg1 : i32, i32, i32
  }
}

module attributes {stable_mosaic.version = 11 : i64} {
  func.func @_merged_conv3x3_s2_kernel(%arg0: i32, %arg1: i32, %arg2: memref<1x8x8x64xf32, #tpu.memory_space<vmem>>, %arg3: memref<1x1x8x64xf32, #tpu.memory_space<vmem>>, %arg4: memref<128x64xf32, #tpu.memory_space<vmem>>, %arg5: memref<1x48x64xf32, #tpu.memory_space<vmem>>, %arg6: memref<1x16x64xf32, #tpu.memory_space<vmem>>) attributes {dimension_semantics = [#tpu.dimension_semantics<parallel>, #tpu.dimension_semantics<parallel>], iteration_bounds = array<i64: 2, 1>, scalar_prefetch = 0 : i64, scratch_operands = 0 : i64, tpu.core_type = #tpu.core_type<tc>, window_params = [{transform_indices = @transform_0, window_bounds = array<i64: 1, 8, 8, 64>}, {transform_indices = @transform_1, window_bounds = array<i64: 1, 1, 8, 64>}, {pipeline_mode = #tpu.pipeline_mode<synchronous>, transform_indices = @transform_2, window_bounds = array<i64: 128, 64>}, {transform_indices = @transform_3, window_bounds = array<i64: 1, 48, 64>}, {transform_indices = @transform_4, window_bounds = array<i64: 1, 16, 64>}]} {
    %c0 = arith.constant 0 : index
    %c0_0 = arith.constant 0 : index
    %c0_1 = arith.constant 0 : index
    %c0_2 = arith.constant 0 : index
    %0 = vector.load %arg2[%c0, %c0_0, %c0_1, %c0_2] : memref<1x8x8x64xf32, #tpu.memory_space<vmem>>, vector<1x8x8x64xf32>
    %1 = vector.shape_cast %0 : vector<1x8x8x64xf32> to vector<8x8x64xf32>
    %c0_3 = arith.constant 0 : index
    %c0_4 = arith.constant 0 : index
    %c0_5 = arith.constant 0 : index
    %c0_6 = arith.constant 0 : index
    %2 = vector.load %arg3[%c0_3, %c0_4, %c0_5, %c0_6] : memref<1x1x8x64xf32, #tpu.memory_space<vmem>>, vector<1x1x8x64xf32>
    %3 = vector.shape_cast %2 : vector<1x1x8x64xf32> to vector<1x8x64xf32>
    %4 = vector.extract_strided_slice %1 {offsets = [1, 0, 0], sizes = [7, 8, 64], strides = [1, 1, 1]} : vector<8x8x64xf32> to vector<7x8x64xf32>
    %5 = tpu.concatenate %4, %3 in 0 : vector<7x8x64xf32>, vector<1x8x64xf32> -> vector<8x8x64xf32>
    %6 = tpu.concatenate %1, %5 in 2 : vector<8x8x64xf32>, vector<8x8x64xf32> -> vector<8x8x128xf32>
    %7 = vector.shape_cast %6 : vector<8x8x128xf32> to vector<64x128xf32>
    %c0_7 = arith.constant 0 : index
    %c0_8 = arith.constant 0 : index
    %8 = vector.load %arg4[%c0_7, %c0_8] : memref<128x64xf32, #tpu.memory_space<vmem>>, vector<128x64xf32>
    %cst = arith.constant dense<0.000000e+00> : vector<64x64xf32>
    %9 = tpu.matmul %7, %8, %cst {dimension_numbers = #tpu.dot_dimension_numbers<[1], [0], [0], [1], [0, 0, 1, 1], [], []>} : vector<64x128xf32>, vector<128x64xf32>, vector<64x64xf32> -> vector<64x64xf32>
    %cst_9 = arith.constant 0.000000e+00 : f32
    %10 = vector.broadcast %cst_9 : f32 to vector<64x64xf32>
    %11 = arith.cmpf ogt, %9, %10 : vector<64x64xf32>
    %cst_10 = arith.constant 1.000000e-01 : f32
    %12 = vector.broadcast %cst_10 : f32 to vector<64x64xf32>
    %13 = arith.mulf %12, %9 : vector<64x64xf32>
    %14 = arith.select %11, %9, %13 : vector<64x64xi1>, vector<64x64xf32>
    %15 = tpu.transpose %14, [1, 0] : vector<64x64xf32> -> vector<64x64xf32>
    %16 = vector.extract_strided_slice %15 {offsets = [0, 0], sizes = [48, 64], strides = [1, 1]} : vector<64x64xf32> to vector<48x64xf32>
    %c0_11 = arith.constant 0 : index
    %c0_12 = arith.constant 0 : index
    %c0_13 = arith.constant 0 : index
    %17 = vector.load %arg5[%c0_11, %c0_12, %c0_13] : memref<1x48x64xf32, #tpu.memory_space<vmem>>, vector<1x48x64xf32>
    %18 = vector.shape_cast %17 : vector<1x48x64xf32> to vector<48x64xf32>
    %19 = vector.shape_cast %16 : vector<48x64xf32> to vector<1x48x64xf32>
    tpu.vector_store %arg5[%c0_11, %c0_12, %c0_13], %19 {strides = array<i32>} : memref<1x48x64xf32, #tpu.memory_space<vmem>>, vector<1x48x64xf32>,
    %20 = vector.extract_strided_slice %15 {offsets = [48, 0], sizes = [16, 64], strides = [1, 1]} : vector<64x64xf32> to vector<16x64xf32>
    %c0_14 = arith.constant 0 : index
    %c0_15 = arith.constant 0 : index
    %c0_16 = arith.constant 0 : index
    %21 = vector.load %arg6[%c0_14, %c0_15, %c0_16] : memref<1x16x64xf32, #tpu.memory_space<vmem>>, vector<1x16x64xf32>
    %22 = vector.shape_cast %21 : vector<1x16x64xf32> to vector<16x64xf32>
    %23 = vector.shape_cast %20 : vector<16x64xf32> to vector<1x16x64xf32>
    tpu.vector_store %arg6[%c0_14, %c0_15, %c0_16], %23 {strides = array<i32>} : memref<1x16x64xf32, #tpu.memory_space<vmem>>, vector<1x16x64xf32>,
    return
  }
  func.func @transform_0(%arg0: i32, %arg1: i32) -> (i32, i32, i32, i32) {
    %c0_i32 = arith.constant 0 : i32
    %c0_i32_0 = arith.constant 0 : i32
    %c0_i32_1 = arith.constant 0 : i32
    return %arg0, %arg1, %c0_i32, %c0_i32_0 : i32, i32, i32, i32
  }
  func.func @transform_1(%arg0: i32, %arg1: i32) -> (i32, i32, i32, i32) {
    %c1_i32 = arith.constant 1 : i32
    %0 = arith.addi %arg1, %c1_i32 : i32
    %c8_i32 = arith.constant 8 : i32
    %1 = arith.muli %0, %c8_i32 : i32
    %c0_i32 = arith.constant 0 : i32
    %c0_i32_0 = arith.constant 0 : i32
    %c0_i32_1 = arith.constant 0 : i32
    return %arg0, %1, %c0_i32, %c0_i32_0 : i32, i32, i32, i32
  }
  func.func @transform_2(%arg0: i32, %arg1: i32) -> (i32, i32) {
    %c0_i32 = arith.constant 0 : i32
    %c0_i32_0 = arith.constant 0 : i32
    %c0_i32_1 = arith.constant 0 : i32
    return %c0_i32, %c0_i32_0 : i32, i32
  }
  func.func @transform_3(%arg0: i32, %arg1: i32) -> (i32, i32, i32) {
    %c0_i32 = arith.constant 0 : i32
    %c0_i32_0 = arith.constant 0 : i32
    return %arg0, %c0_i32, %arg1 : i32, i32, i32
  }
  func.func @transform_4(%arg0: i32, %arg1: i32) -> (i32, i32, i32) {
    %c0_i32 = arith.constant 0 : i32
    %c0_i32_0 = arith.constant 0 : i32
    return %arg0, %c0_i32, %arg1 : i32, i32, i32
  }
}

</mosaic_0001>

<llo_original>
// kernel: calibrated_backprojection_block.3
$region0: #{calibrated_backprojection_block.3}
  #allocation0 [shape = 'u32[]', space=smem, size = 0x4, offset = 0x4, fixed_abs, tag = 'smem constant byte address 0x4 - core index']
  #allocation1 [shape = 'u32[144,128]{1,0:T(1,128)}', space=vmem, size = 0x12000, scoped, tag = 'internal scratch']
  %s0 = inlined_call_operand.vmem [shape: f32[2,8,512], index: 0, kind: input, shape index: {}]
  %s1 = inlined_call_operand.vmem [shape: f32[2,1], index: 1, kind: input, shape index: {}]
  %s2 = inlined_call_operand.vmem [shape: f32[48,8], index: 2, kind: input, shape index: {}]
  %s3 = inlined_call_operand.vmem [shape: f32[48,3], index: 3, kind: input, shape index: {}]
  %s4 = inlined_call_operand.vmem [shape: f32[2,48,512], index: 4, kind: output, shape index: {}]
  %s5 = sld [smem:[#allocation0]]
  $region49: #{calibrated_backprojection_block.3} parent=0
    _
  %s7 = ssub.s32 1, %s5
  %s8 = scalar_select 0, %s7, %s5
  loop: start=0, step=1, limit=4
  $region2: #{calibrated_backprojection_block.3} parent=0 // loop_pre_header
    _
  $region3: #{calibrated_backprojection_block.3} parent=0 // loop_header
    %s10 = sphi 0, %s14
    %p11 = scmp.ge.s32.totalorder %s10, 4
    %s17 = sphi 0, %s29
    %s18 = sphi 0, %s25
    %s19 = sphi 0, %s17
    %s20 = sphi 0, %s18
    %s21 = sphi 0, %s19
    %s22 = sphi 0, %s20
    %s34 = sphi 0, %s36
    %s37 = sphi 0, %s34
    %s38 = sphi 0, %s37
    %s54 = sphi 0, %s38
    %s58 = sphi 0, %s58
    %s60 = sphi 0, %s58
    %s61 = sphi 0, %s60
    %s75 = sphi 0, %s61
    %s79 = sphi 0, %s79
    %s81 = sphi 0, %s79
    %s82 = sphi 0, %s81
    %s96 = sphi 0, %s82
    %s100 = sphi 0, %s100
    %s102 = sphi 0, %s100
    %s103 = sphi 0, %s102
    %s117 = sphi 0, %s103
    %s125 = sphi 0, %s127
    %s128 = sphi 0, %s125
    %s129 = sphi 0, %s128
    %s145 = sphi 0, %s129
  $region4: #{calibrated_backprojection_block.3} parent=0 // loop_header_branch
    %13 = sbr.rel (%p11) target = $region8
  $region5: #{calibrated_backprojection_block.3} parent=0 // loop_body
    %s15 = ssub.s32 %s10, 1
    %s16 = ssub.s32 %s10, 2
    %s23 = sadd.s32 1, %s18
    %p24 = scmp.ge.s32.totalorder %s23, 1
    %s25 = scalar_select %p24, 0, %s23
    %s26 = sadd.s32 1, %s17
    %s27 = scalar_select %p24, %s26, %s17
    %p28 = scmp.ge.s32.totalorder %s27, 2
    %s29 = scalar_select %p28, 0, %s27
    %s30 = ssub.s32 %s17, %s29
    %s31 = ssub.s32 %s18, %s25
    %s32 = sor.u32 %s30, %s31
    %p33 = scmp.eq.s32.totalorder %s32, 0
    %s35 = sadd.s32 %s34, 1
    %s36 = scalar_select %p33, %s34, %s35
    %p39 = pneg %p33
    %p40 = scmp.eq.s32.totalorder %s10, 1
    %p41 = por %p39, %p40
    %p42 = scmp.ne.s32.totalorder %s34, %s37
    %p43 = scmp.eq.s32.totalorder %s10, 0
    %p44 = por %p42, %p43
    %p45 = scmp.ne.s32.totalorder %s34, %s37
    %p46 = scmp.eq.s32.totalorder %s15, 1
    %p47 = por %p45, %p46
    %p48 = scmp.ne.s32.totalorder %s37, %s38
    %p49 = scmp.eq.s32.totalorder %s15, 0
    %p50 = por %p48, %p49
    %p51 = scmp.ne.s32.totalorder %s37, %s38
    %p52 = scmp.eq.s32.totalorder %s16, 1
    %p53 = por %p51, %p52
    %p55 = scmp.ne.s32.totalorder %s38, %s54
    %p56 = scmp.eq.s32.totalorder %s16, 0
    %p57 = por %p55, %p56
    %s59 = sadd.s32 %s58, 1
    %p62 = scmp.eq.s32.totalorder %s10, 1
    %p63 = scmp.ne.s32.totalorder %s58, %s60
    %p64 = scmp.eq.s32.totalorder %s10, 0
    %p65 = por %p63, %p64
    %p66 = scmp.ne.s32.totalorder %s58, %s60
    %p67 = scmp.eq.s32.totalorder %s15, 1
    %p68 = por %p66, %p67
    %p69 = scmp.ne.s32.totalorder %s60, %s61
    %p70 = scmp.eq.s32.totalorder %s15, 0
    %p71 = por %p69, %p70
    %p72 = scmp.ne.s32.totalorder %s60, %s61
    %p73 = scmp.eq.s32.totalorder %s16, 1
    %p74 = por %p72, %p73
    %p76 = scmp.ne.s32.totalorder %s61, %s75
    %p77 = scmp.eq.s32.totalorder %s16, 0
    %p78 = por %p76, %p77
    %s80 = sadd.s32 %s79, 1
    %p83 = scmp.eq.s32.totalorder %s10, 1
    %p84 = scmp.ne.s32.totalorder %s79, %s81
    %p85 = scmp.eq.s32.totalorder %s10, 0
    %p86 = por %p84, %p85
    %p87 = scmp.ne.s32.totalorder %s79, %s81
    %p88 = scmp.eq.s32.totalorder %s15, 1
    %p89 = por %p87, %p88
    %p90 = scmp.ne.s32.totalorder %s81, %s82
    %p91 = scmp.eq.s32.totalorder %s15, 0
    %p92 = por %p90, %p91
    %p93 = scmp.ne.s32.totalorder %s81, %s82
    %p94 = scmp.eq.s32.totalorder %s16, 1
    %p95 = por %p93, %p94
    %p97 = scmp.ne.s32.totalorder %s82, %s96
    %p98 = scmp.eq.s32.totalorder %s16, 0
    %p99 = por %p97, %p98
    %s101 = sadd.s32 %s100, 1
    %p104 = scmp.eq.s32.totalorder %s10, 1
    %p105 = scmp.ne.s32.totalorder %s100, %s102
    %p106 = scmp.eq.s32.totalorder %s10, 0
    %p107 = por %p105, %p106
    %p108 = scmp.ne.s32.totalorder %s100, %s102
    %p109 = scmp.eq.s32.totalorder %s15, 1
    %p110 = por %p108, %p109
    %p111 = scmp.ne.s32.totalorder %s102, %s103
    %p112 = scmp.eq.s32.totalorder %s15, 0
    %p113 = por %p111, %p112
    %p114 = scmp.ne.s32.totalorder %s102, %s103
    %p115 = scmp.eq.s32.totalorder %s16, 1
    %p116 = por %p114, %p115
    %p118 = scmp.ne.s32.totalorder %s103, %s117
    %p119 = scmp.eq.s32.totalorder %s16, 0
    %p120 = por %p118, %p119
    %s121 = ssub.s32 %s17, %s29
    %s122 = ssub.s32 %s18, %s25
    %s123 = sor.u32 %s121, %s122
    %p124 = scmp.eq.s32.totalorder %s123, 0
    %s126 = sadd.s32 %s125, 1
    %s127 = scalar_select %p124, %s125, %s126
    %p130 = pneg %p124
    %p131 = scmp.eq.s32.totalorder %s10, 1
    %p132 = por %p130, %p131
    %p133 = scmp.ne.s32.totalorder %s125, %s128
    %p134 = scmp.eq.s32.totalorder %s10, 0
    %p135 = por %p133, %p134
    %p136 = scmp.ne.s32.totalorder %s125, %s128
    %p137 = scmp.eq.s32.totalorder %s15, 1
    %p138 = por %p136, %p137
    %p139 = scmp.ne.s32.totalorder %s128, %s129
    %p140 = scmp.eq.s32.totalorder %s15, 0
    %p141 = por %p139, %p140
    %p142 = scmp.ne.s32.totalorder %s128, %s129
    %p143 = scmp.eq.s32.totalorder %s16, 1
    %p144 = por %p142, %p143
    %p146 = scmp.ne.s32.totalorder %s129, %s145
    %p147 = scmp.eq.s32.totalorder %s16, 0
    %p148 = por %p146, %p147
    %p149 = scmp.le.s32.totalorder 1, %s10
    %p150 = scmp.lt.s32.totalorder %s10, 3
    %p151 = pnand %p149, %p150
    %p152 = pneg %p151
    // Predicated region
    $region9: #{calibrated_backprojection_block.3} parent=5 // pred_check
      _
    $region10: #{calibrated_backprojection_block.3} parent=5 // pred_check_branch
      %154 = sbr.rel (%p151) target = $region12
    $region11: #{calibrated_backprojection_block.3} parent=5 // pred_region
      %s155 = ssub.s32 %s10, 1
      // Predicated region
      $region13: #{calibrated_backprojection_block.3} parent=11 // pred_check
        %p156 = pneg %p71
      $region14: #{calibrated_backprojection_block.3} parent=11 // pred_check_branch
        %158 = sbr.rel (%p156) target = $region16
      $region15: #{calibrated_backprojection_block.3} parent=11 // pred_region
        _
      $region16: #{calibrated_backprojection_block.3} parent=11 // pred_fallthru
        _
      // Predicated region
      $region17: #{calibrated_backprojection_block.3} parent=11 // pred_check
        %p159 = pneg %p92
      $region18: #{calibrated_backprojection_block.3} parent=11 // pred_check_branch
        %161 = sbr.rel (%p159) target = $region20
      $region19: #{calibrated_backprojection_block.3} parent=11 // pred_region
        _
      $region20: #{calibrated_backprojection_block.3} parent=11 // pred_fallthru
        _
      // Predicated region
      $region21: #{calibrated_backprojection_block.3} parent=11 // pred_check
        %p162 = pneg %p113
      $region22: #{calibrated_backprojection_block.3} parent=11 // pred_check_branch
        %164 = sbr.rel (%p162) target = $region24
      $region23: #{calibrated_backprojection_block.3} parent=11 // pred_region
        _
      $region24: #{calibrated_backprojection_block.3} parent=11 // pred_fallthru
        _
    $region12: #{calibrated_backprojection_block.3} parent=5 // pred_fallthru
      _
    %p165 = scmp.lt.s32.totalorder %s10, 2
    // Predicated region
    $region25: #{calibrated_backprojection_block.3} parent=5 // pred_check
      %p166 = pneg %p165
    $region26: #{calibrated_backprojection_block.3} parent=5 // pred_check_branch
      %168 = sbr.rel (%p166) target = $region28
    $region27: #{calibrated_backprojection_block.3} parent=5 // pred_region
      // Predicated region
      $region29: #{calibrated_backprojection_block.3} parent=27 // pred_check
        %p169 = pneg %p44
      $region30: #{calibrated_backprojection_block.3} parent=27 // pred_check_branch
        %171 = sbr.rel (%p169) target = $region32
      $region31: #{calibrated_backprojection_block.3} parent=27 // pred_region
        %s172 = smul.u32 4, %s18
        %p173 = scmp.lt.s32.totalorder %s17, 1
        %s174 = scalar_select %p173, %s17, 1
        %p175 = scmp.lt.s32.totalorder %s172, 3
        %s176 = scalar_select %p175, %s172, 3
        %s177 = smul.addr %s174, 4
        %s178 = sadd.s32 %s176, %s177
        %s179 = smul.addr %s178, 8
        %s180 = scalar_lea.vmem %s0, %s179
        %s181 = smul.u32 4, %s18
      $region32: #{calibrated_backprojection_block.3} parent=27 // pred_fallthru
        _
    $region28: #{calibrated_backprojection_block.3} parent=5 // pred_fallthru
      _
    %p182 = scmp.le.s32.totalorder 1, %s10
    %p183 = scmp.lt.s32.totalorder %s10, 3
    %p184 = pnand %p182, %p183
    %p185 = pneg %p184
    // Predicated region
    $region33: #{calibrated_backprojection_block.3} parent=5 // pred_check
      _
    $region34: #{calibrated_backprojection_block.3} parent=5 // pred_check_branch
      %187 = sbr.rel (%p184) target = $region36
    $region35: #{calibrated_backprojection_block.3} parent=5 // pred_region
      %s188 = ssub.s32 %s10, 1
      %s189 = smul.u32 4, %s20
      %p190 = scmp.lt.s32.totalorder %s19, 1
      %s191 = scalar_select %p190, %s19, 1
      %p192 = scmp.lt.s32.totalorder %s189, 3
      %s193 = scalar_select %p192, %s189, 3
      %s194 = smul.addr %s191, 4
      %s195 = sadd.s32 %s193, %s194
      %s196 = smul.addr %s195, 8
      %s197 = scalar_lea.vmem %s0, %s196
      %p198 = pneg %p50
      %p199 = pneg %p47
      %p200 = pneg %p71
      %p201 = pneg %p68
      %p202 = pneg %p92
      %p203 = pneg %p89
      %p204 = pneg %p113
      %p205 = pneg %p110
      %p206 = pneg %p141
      %p207 = pneg %p138
      %s208 = smul.u32 4, %s20
      %p209 = scmp.lt.s32.totalorder %s19, 1
      %s210 = scalar_select %p209, %s19, 1
      %p211 = scmp.lt.s32.totalorder %s208, 3
      %s212 = scalar_select %p211, %s208, 3
      %s213 = smul.addr %s210, 24
      %s214 = sadd.s32 %s212, %s213
      %s215 = smul.addr %s214, 8
      %s216 = scalar_lea.vmem %s4, %s215
      %s217 = smul.u32 4, %s20
      %p218 = scmp.lt.s32.totalorder %s19, 1
      %s219 = scalar_select %p218, %s19, 1
      %p220 = scmp.lt.s32.totalorder %s217, 3
      %s221 = scalar_select %p220, %s217, 3
      %s222 = smul.addr %s219, 4
      %s223 = sadd.s32 %s221, %s222
      %s224 = smul.addr %s223, 8
      %s225 = scalar_lea.vmem %s0, %s224
      %s226 = smul.u32 4, %s20
      %s227 = smul.u32 4, %s20
      %p228 = scmp.lt.s32.totalorder %s19, 1
      %s229 = scalar_select %p228, %s19, 1
      %p230 = scmp.lt.s32.totalorder %s227, 3
      %s231 = scalar_select %p230, %s227, 3
      %s232 = smul.addr %s229, 24
      %s233 = sadd.s32 %s231, %s232
      %s234 = smul.addr %s233, 8
      %s235 = scalar_lea.vmem %s4, %s234
      %s236 = smul.u32 4, %s20
      %v237 = vld [vmem:[%s225] sm:$0xff]
      %v238 = vld [vmem:[%s225 + $0x8] sm:$0xff]
      %v239 = vld [vmem:[%s225 + $0x10] sm:$0xff]
      %v240 = vld [vmem:[%s225 + $0x18] sm:$0xff]
      %v241 = vld [vmem:[%s1] sm:$0x3]
      %243 = vset.pattern.permute.xlu0 0
      %244 = vperm.xlu0 %243, %v241
      %v245 = vpop.permute.xlu0 %244
      %v246 = vrot.slane %v245, 5
      %v248 = vmul.f32 %v237, %v246
      %v249 = vmul.f32 %v238, %v246
      %v250 = vmul.f32 %v239, %v246
      %v251 = vmul.f32 %v240, %v246
      %v256 = vrot.slane %v248, 3
      %v257 = vrot.slane %v249, 3
      %v258 = vrot.slane %v250, 3
      %v259 = vrot.slane %v251, 3
      %vm264 = vcmask 1041408
      %v265 = vsel %vm264, %v256, 0.0
      %v266 = vrot.slane %v265, 4
      %v267 = vadd.f32 %v265, %v266
      %v268 = vrot.slane %v267, 2
      %v269 = vadd.f32 %v267, %v268
      %v270 = vrot.slane %v269, 1
      %v271 = vadd.f32 %v269, %v270
      %v272 = vsel %vm264, %v257, 0.0
      %v273 = vrot.slane %v272, 4
      %v274 = vadd.f32 %v272, %v273
      %v275 = vrot.slane %v274, 2
      %v276 = vadd.f32 %v274, %v275
      %v277 = vrot.slane %v276, 1
      %v278 = vadd.f32 %v276, %v277
      %v279 = vsel %vm264, %v258, 0.0
      %v280 = vrot.slane %v279, 4
      %v281 = vadd.f32 %v279, %v280
      %v282 = vrot.slane %v281, 2
      %v283 = vadd.f32 %v281, %v282
      %v284 = vrot.slane %v283, 1
      %v285 = vadd.f32 %v283, %v284
      %v286 = vsel %vm264, %v259, 0.0
      %v287 = vrot.slane %v286, 4
      %v288 = vadd.f32 %v286, %v287
      %v289 = vrot.slane %v288, 2
      %v290 = vadd.f32 %v288, %v289
      %v291 = vrot.slane %v290, 1
      %v292 = vadd.f32 %v290, %v291
      %vm293 = vcmp.gt.f32.partialorder %v271, 0.0
      %vm294 = vcmp.gt.f32.partialorder %v278, 0.0
      %vm295 = vcmp.gt.f32.partialorder %v285, 0.0
      %vm296 = vcmp.gt.f32.partialorder %v292, 0.0
      %v297 = vmul.f32 %v271, 0.1
      %v298 = vmul.f32 %v278, 0.1
      %v299 = vmul.f32 %v285, 0.1
      %v300 = vmul.f32 %v292, 0.1
      %v301 = vsel %vm293, %v271, %v297
      %v302 = vsel %vm294, %v278, %v298
      %v303 = vsel %vm295, %v285, %v299
      %v304 = vsel %vm296, %v292, %v300
      %v305 = vmul.f32 %v237, %v301
      %v306 = vmul.f32 %v238, %v302
      %v307 = vmul.f32 %v239, %v303
      %v308 = vmul.f32 %v240, %v304
      %v309 = vld [vmem:[%s2] sm:$0xff]
      %v310 = vld [vmem:[%s2 + $0x8] sm:$0xff]
      %v311 = vld [vmem:[%s2 + $0x10] sm:$0xff]
      %v312 = vld [vmem:[%s2 + $0x18] sm:$0xff]
      %v313 = vld [vmem:[%s2 + $0x20] sm:$0xff]
      %v314 = vld [vmem:[%s2 + $0x28] sm:$0xff]
      %v315 = vld [vmem:[%s3] sm:$0xff]
      %v316 = vld [vmem:[%s3 + $0x8] sm:$0xff]
      %v317 = vld [vmem:[%s3 + $0x10] sm:$0xff]
      %v318 = vld [vmem:[%s3 + $0x18] sm:$0xff]
      %v319 = vld [vmem:[%s3 + $0x20] sm:$0xff]
      %v320 = vld [vmem:[%s3 + $0x28] sm:$0xff]
      %v325 = vrot.slane %v305, 5
      %v326 = vrot.slane %v306, 5
      %v327 = vrot.slane %v307, 5
      %v328 = vrot.slane %v308, 5
      %vm329 = vcmask 23552
      %v331 = vsel %vm329, %v315, 0
      %v334 = vsel %vm329, %v316, 0
      %v337 = vsel %vm329, %v317, 0
      %v340 = vsel %vm329, %v318, 0
      %v343 = vsel %vm329, %v319, 0
      %v346 = vsel %vm329, %v320, 0
      %vm348 = vcmask 1042432
      %v349 = vsel %vm348, %v325, 0
      %v351 = vsel %vm348, %v326, 0
      %v353 = vsel %vm348, %v327, 0
      %v355 = vsel %vm348, %v328, 0
      %357 = vmatprep.subr.mxu0 0.0
      %358 = vmatpush1.msra.mxu0 0.0
      %359 = vmatprep.subr.mxu0 0.0
      %360 = vmatpush1.msra.mxu0 0.0
      %361 = vmatprep.subr.mxu0 0.0
      %362 = vmatpush1.msra.mxu0 0.0
      %363 = vmatprep.subr.mxu0 0.0
      %364 = vmatpush1.msra.mxu0 0.0
      %365 = vmatprep.subr.mxu0 0.0
      %366 = vmatpush1.msra.mxu0 0.0
      %367 = vmatprep.subr.mxu0 0.0
      %368 = vmatpush1.msra.mxu0 0.0
      %369 = vmatprep.subr.mxu0 0.0
      %370 = vmatpush1.msra.mxu0 0.0
      %371 = vmatprep.subr.mxu0 0.0
      %372 = vmatpush1.msra.mxu0 0.0
      %373 = vmatprep.subr.mxu0 0.0
      %374 = vmatpush1.msra.mxu0 0.0
      %375 = vmatprep.subr.mxu0 0.0
      %376 = vmatpush1.msra.mxu0 0.0
      %377 = vmatprep.subr.mxu0 0.0
      %378 = vmatpush1.msra.mxu0 0.0
      %379 = vmatprep.subr.mxu0 0.0
      %380 = vmatpush1.msra.mxu0 0.0
      %381 = vmatprep.subr.mxu0 0.0
      %382 = vmatpush1.msra.mxu0 0.0
      %383 = vmatprep.subr.mxu0 0.0
      %384 = vmatpush1.msra.mxu0 0.0
      %385 = vmatprep.subr.mxu0 0.0
      %386 = vmatpush1.msra.mxu0 0.0
      %387 = vmatprep.subr.mxu0 %v351
      %388 = vmatpush1.msra.mxu0 %v349
      %389 = vmatprep.subr.mxu0 0.0
      %390 = vmatpush2.msra.mxu0 0.0
      %391 = vmatprep.subr.mxu0 0.0
      %392 = vmatpush2.msra.mxu0 0.0
      %393 = vmatprep.subr.mxu0 0.0
      %394 = vmatpush2.msra.mxu0 0.0
      %395 = vmatprep.subr.mxu0 0.0
      %396 = vmatpush2.msra.mxu0 0.0
      %397 = vmatprep.subr.mxu0 0.0
      %398 = vmatpush2.msra.mxu0 0.0
      %399 = vmatprep.subr.mxu0 0.0
      %400 = vmatpush2.msra.mxu0 0.0
      %401 = vmatprep.subr.mxu0 0.0
      %402 = vmatpush2.msra.mxu0 0.0
      %403 = vmatprep.subr.mxu0 0.0
      %404 = vmatpush2.msra.mxu0 0.0
      %405 = vmatprep.subr.mxu0 0.0
      %406 = vmatpush2.msra.mxu0 0.0
      %407 = vmatprep.subr.mxu0 0.0
      %408 = vmatpush2.msra.mxu0 0.0
      %409 = vmatprep.subr.mxu0 0.0
      %410 = vmatpush2.msra.mxu0 0.0
      %411 = vmatprep.subr.mxu0 0.0
      %412 = vmatpush2.msra.mxu0 0.0
      %413 = vmatprep.subr.mxu0 0.0
      %414 = vmatpush2.msra.mxu0 0.0
      %415 = vmatprep.subr.mxu0 0.0
      %416 = vmatpush2.msra.mxu0 0.0
      %417 = vmatprep.subr.mxu0 0.0
      %418 = vmatpush2.msra.mxu0 0.0
      %419 = vmatprep.subr.mxu0 0.0
      %420 = vmatpush2.msra.mxu0 0.0
      %421 = vmatprep.mubr.f32.mxu0 0.0
      %422 = vmatmul.mubr.f32.gmra.mxu0 %v331
      %v423 = vpop.f32.mrf.mxu0
      %v424 = vadd.f32 0.0, %v423
      %v425 = vpop.f32.mrf.mxu0
      %v426 = vadd.f32 0.0, %v425
      %427 = vmatprep.mubr.f32.mxu0 0.0
      %428 = vmatmul.mubr.f32.gmra.mxu0 %v334
      %v429 = vpop.f32.mrf.mxu0
      %v430 = vadd.f32 0.0, %v429
      %v431 = vpop.f32.mrf.mxu0
      %v432 = vadd.f32 0.0, %v431
      %433 = vmatprep.mubr.f32.mxu0 0.0
      %434 = vmatmul.mubr.f32.gmra.mxu0 %v337
      %v435 = vpop.f32.mrf.mxu0
      %v436 = vadd.f32 0.0, %v435
      %v437 = vpop.f32.mrf.mxu0
      %v438 = vadd.f32 0.0, %v437
      %439 = vmatprep.mubr.f32.mxu0 0.0
      %440 = vmatmul.mubr.f32.gmra.mxu0 %v340
      %v441 = vpop.f32.mrf.mxu0
      %v442 = vadd.f32 0.0, %v441
      %v443 = vpop.f32.mrf.mxu0
      %v444 = vadd.f32 0.0, %v443
      %445 = vmatprep.mubr.f32.mxu0 0.0
      %446 = vmatmul.mubr.f32.gmra.mxu0 %v343
      %v447 = vpop.f32.mrf.mxu0
      %v448 = vadd.f32 0.0, %v447
      %v449 = vpop.f32.mrf.mxu0
      %v450 = vadd.f32 0.0, %v449
      %451 = vmatprep.mubr.f32.mxu0 0.0
      %452 = vmatmul.mubr.f32.gmra.mxu0 %v346
      %v453 = vpop.f32.mrf.mxu0
      %v454 = vadd.f32 0.0, %v453
      %v455 = vpop.f32.mrf.mxu0
      %v456 = vadd.f32 0.0, %v455
      %457 = vdwg.mxu0
      %458 = vmatprep.subr.mxu0 0.0
      %459 = vmatpush1.msra.mxu0 0.0
      %460 = vmatprep.subr.mxu0 0.0
      %461 = vmatpush1.msra.mxu0 0.0
      %462 = vmatprep.subr.mxu0 0.0
      %463 = vmatpush1.msra.mxu0 0.0
      %464 = vmatprep.subr.mxu0 0.0
      %465 = vmatpush1.msra.mxu0 0.0
      %466 = vmatprep.subr.mxu0 0.0
      %467 = vmatpush1.msra.mxu0 0.0
      %468 = vmatprep.subr.mxu0 0.0
      %469 = vmatpush1.msra.mxu0 0.0
      %470 = vmatprep.subr.mxu0 0.0
      %471 = vmatpush1.msra.mxu0 0.0
      %472 = vmatprep.subr.mxu0 0.0
      %473 = vmatpush1.msra.mxu0 0.0
      %474 = vmatprep.subr.mxu0 0.0
      %475 = vmatpush1.msra.mxu0 0.0
      %476 = vmatprep.subr.mxu0 0.0
      %477 = vmatpush1.msra.mxu0 0.0
      %478 = vmatprep.subr.mxu0 0.0
      %479 = vmatpush1.msra.mxu0 0.0
      %480 = vmatprep.subr.mxu0 0.0
      %481 = vmatpush1.msra.mxu0 0.0
      %482 = vmatprep.subr.mxu0 0.0
      %483 = vmatpush1.msra.mxu0 0.0
      %484 = vmatprep.subr.mxu0 0.0
      %485 = vmatpush1.msra.mxu0 0.0
      %486 = vmatprep.subr.mxu0 0.0
      %487 = vmatpush1.msra.mxu0 0.0
      %488 = vmatprep.subr.mxu0 %v355
      %489 = vmatpush1.msra.mxu0 %v353
      %490 = vmatprep.subr.mxu0 0.0
      %491 = vmatpush2.msra.mxu0 0.0
      %492 = vmatprep.subr.mxu0 0.0
      %493 = vmatpush2.msra.mxu0 0.0
      %494 = vmatprep.subr.mxu0 0.0
      %495 = vmatpush2.msra.mxu0 0.0
      %496 = vmatprep.subr.mxu0 0.0
      %497 = vmatpush2.msra.mxu0 0.0
      %498 = vmatprep.subr.mxu0 0.0
      %499 = vmatpush2.msra.mxu0 0.0
      %500 = vmatprep.subr.mxu0 0.0
      %501 = vmatpush2.msra.mxu0 0.0
      %502 = vmatprep.subr.mxu0 0.0
      %503 = vmatpush2.msra.mxu0 0.0
      %504 = vmatprep.subr.mxu0 0.0
      %505 = vmatpush2.msra.mxu0 0.0
      %506 = vmatprep.subr.mxu0 0.0
      %507 = vmatpush2.msra.mxu0 0.0
      %508 = vmatprep.subr.mxu0 0.0
      %509 = vmatpush2.msra.mxu0 0.0
      %510 = vmatprep.subr.mxu0 0.0
      %511 = vmatpush2.msra.mxu0 0.0
      %512 = vmatprep.subr.mxu0 0.0
      %513 = vmatpush2.msra.mxu0 0.0
      %514 = vmatprep.subr.mxu0 0.0
      %515 = vmatpush2.msra.mxu0 0.0
      %516 = vmatprep.subr.mxu0 0.0
      %517 = vmatpush2.msra.mxu0 0.0
      %518 = vmatprep.subr.mxu0 0.0
      %519 = vmatpush2.msra.mxu0 0.0
      %520 = vmatprep.subr.mxu0 0.0
      %521 = vmatpush2.msra.mxu0 0.0
      %522 = vmatprep.mubr.f32.mxu0 0.0
      %523 = vmatmul.mubr.f32.gmra.mxu0 %v331
      %v524 = vpop.f32.mrf.mxu0
      %v525 = vadd.f32 0.0, %v524
      %v526 = vpop.f32.mrf.mxu0
      %v527 = vadd.f32 0.0, %v526
      %528 = vmatprep.mubr.f32.mxu0 0.0
      %529 = vmatmul.mubr.f32.gmra.mxu0 %v334
      %v530 = vpop.f32.mrf.mxu0
      %v531 = vadd.f32 0.0, %v530
      %v532 = vpop.f32.mrf.mxu0
      %v533 = vadd.f32 0.0, %v532
      %534 = vmatprep.mubr.f32.mxu0 0.0
      %535 = vmatmul.mubr.f32.gmra.mxu0 %v337
      %v536 = vpop.f32.mrf.mxu0
      %v537 = vadd.f32 0.0, %v536
      %v538 = vpop.f32.mrf.mxu0
      %v539 = vadd.f32 0.0, %v538
      %540 = vmatprep.mubr.f32.mxu0 0.0
      %541 = vmatmul.mubr.f32.gmra.mxu0 %v340
      %v542 = vpop.f32.mrf.mxu0
      %v543 = vadd.f32 0.0, %v542
      %v544 = vpop.f32.mrf.mxu0
      %v545 = vadd.f32 0.0, %v544
      %546 = vmatprep.mubr.f32.mxu0 0.0
      %547 = vmatmul.mubr.f32.gmra.mxu0 %v343
      %v548 = vpop.f32.mrf.mxu0
      %v549 = vadd.f32 0.0, %v548
      %v550 = vpop.f32.mrf.mxu0
      %v551 = vadd.f32 0.0, %v550
      %552 = vmatprep.mubr.f32.mxu0 0.0
      %553 = vmatmul.mubr.f32.gmra.mxu0 %v346
      %v554 = vpop.f32.mrf.mxu0
      %v555 = vadd.f32 0.0, %v554
      %v556 = vpop.f32.mrf.mxu0
      %v557 = vadd.f32 0.0, %v556
      %558 = vdwg.mxu0
      %vm559 = vcmask 64512
      %v561 = vsel %vm559, %v309, 0
      %v564 = vsel %vm559, %v310, 0
      %v567 = vsel %vm559, %v311, 0
      %v570 = vsel %vm559, %v312, 0
      %v573 = vsel %vm559, %v313, 0
      %v576 = vsel %vm559, %v314, 0
      %578 = vmatprep.subr.mxu0 0.0
      %579 = vmatpush1.msra.mxu0 0.0
      %580 = vmatprep.subr.mxu0 0.0
      %581 = vmatpush1.msra.mxu0 0.0
      %582 = vmatprep.subr.mxu0 0.0
      %583 = vmatpush1.msra.mxu0 0.0
      %584 = vmatprep.subr.mxu0 0.0
      %585 = vmatpush1.msra.mxu0 0.0
      %586 = vmatprep.subr.mxu0 0.0
      %587 = vmatpush1.msra.mxu0 0.0
      %588 = vmatprep.subr.mxu0 0.0
      %589 = vmatpush1.msra.mxu0 0.0
      %590 = vmatprep.subr.mxu0 0.0
      %591 = vmatpush1.msra.mxu0 0.0
      %592 = vmatprep.subr.mxu0 0.0
      %593 = vmatpush1.msra.mxu0 0.0
      %594 = vmatprep.subr.mxu0 0.0
      %595 = vmatpush1.msra.mxu0 0.0
      %596 = vmatprep.subr.mxu0 0.0
      %597 = vmatpush1.msra.mxu0 0.0
      %598 = vmatprep.subr.mxu0 0.0
      %599 = vmatpush1.msra.mxu0 0.0
      %600 = vmatprep.subr.mxu0 0.0
      %601 = vmatpush1.msra.mxu0 0.0
      %602 = vmatprep.subr.mxu0 0.0
      %603 = vmatpush1.msra.mxu0 0.0
      %604 = vmatprep.subr.mxu0 0.0
      %605 = vmatpush1.msra.mxu0 0.0
      %606 = vmatprep.subr.mxu0 0.0
      %607 = vmatpush1.msra.mxu0 0.0
      %608 = vmatprep.subr.mxu0 %v238
      %609 = vmatpush1.msra.mxu0 %v237
      %610 = vmatprep.subr.mxu0 0.0
      %611 = vmatpush2.msra.mxu0 0.0
      %612 = vmatprep.subr.mxu0 0.0
      %613 = vmatpush2.msra.mxu0 0.0
      %614 = vmatprep.subr.mxu0 0.0
      %615 = vmatpush2.msra.mxu0 0.0
      %616 = vmatprep.subr.mxu0 0.0
      %617 = vmatpush2.msra.mxu0 0.0
      %618 = vmatprep.subr.mxu0 0.0
      %619 = vmatpush2.msra.mxu0 0.0
      %620 = vmatprep.subr.mxu0 0.0
      %621 = vmatpush2.msra.mxu0 0.0
      %622 = vmatprep.subr.mxu0 0.0
      %623 = vmatpush2.msra.mxu0 0.0
      %624 = vmatprep.subr.mxu0 0.0
      %625 = vmatpush2.msra.mxu0 0.0
      %626 = vmatprep.subr.mxu0 0.0
      %627 = vmatpush2.msra.mxu0 0.0
      %628 = vmatprep.subr.mxu0 0.0
      %629 = vmatpush2.msra.mxu0 0.0
      %630 = vmatprep.subr.mxu0 0.0
      %631 = vmatpush2.msra.mxu0 0.0
      %632 = vmatprep.subr.mxu0 0.0
      %633 = vmatpush2.msra.mxu0 0.0
      %634 = vmatprep.subr.mxu0 0.0
      %635 = vmatpush2.msra.mxu0 0.0
      %636 = vmatprep.subr.mxu0 0.0
      %637 = vmatpush2.msra.mxu0 0.0
      %638 = vmatprep.subr.mxu0 0.0
      %639 = vmatpush2.msra.mxu0 0.0
      %640 = vmatprep.subr.mxu0 0.0
      %641 = vmatpush2.msra.mxu0 0.0
      %642 = vmatprep.mubr.f32.mxu0 0.0
      %643 = vmatmul.mubr.f32.gmra.mxu0 %v561
      %v644 = vpop.f32.mrf.mxu0
      %v645 = vadd.f32 %v424, %v644
      %v646 = vpop.f32.mrf.mxu0
      %v647 = vadd.f32 %v426, %v646
      %648 = vmatprep.mubr.f32.mxu0 0.0
      %649 = vmatmul.mubr.f32.gmra.mxu0 %v564
      %v650 = vpop.f32.mrf.mxu0
      %v651 = vadd.f32 %v430, %v650
      %v652 = vpop.f32.mrf.mxu0
      %v653 = vadd.f32 %v432, %v652
      %654 = vmatprep.mubr.f32.mxu0 0.0
      %655 = vmatmul.mubr.f32.gmra.mxu0 %v567
      %v656 = vpop.f32.mrf.mxu0
      %v657 = vadd.f32 %v436, %v656
      %v658 = vpop.f32.mrf.mxu0
      %v659 = vadd.f32 %v438, %v658
      %660 = vmatprep.mubr.f32.mxu0 0.0
      %661 = vmatmul.mubr.f32.gmra.mxu0 %v570
      %v662 = vpop.f32.mrf.mxu0
      %v663 = vadd.f32 %v442, %v662
      %v664 = vpop.f32.mrf.mxu0
      %v665 = vadd.f32 %v444, %v664
      %666 = vmatprep.mubr.f32.mxu0 0.0
      %667 = vmatmul.mubr.f32.gmra.mxu0 %v573
      %v668 = vpop.f32.mrf.mxu0
      %v669 = vadd.f32 %v448, %v668
      %v670 = vpop.f32.mrf.mxu0
      %v671 = vadd.f32 %v450, %v670
      %672 = vmatprep.mubr.f32.mxu0 0.0
      %673 = vmatmul.mubr.f32.gmra.mxu0 %v576
      %v674 = vpop.f32.mrf.mxu0
      %v675 = vadd.f32 %v454, %v674
      %v676 = vpop.f32.mrf.mxu0
      %v677 = vadd.f32 %v456, %v676
      %678 = vdwg.mxu0
      %679 = vmatprep.subr.mxu0 0.0
      %680 = vmatpush1.msra.mxu0 0.0
      %681 = vmatprep.subr.mxu0 0.0
      %682 = vmatpush1.msra.mxu0 0.0
      %683 = vmatprep.subr.mxu0 0.0
      %684 = vmatpush1.msra.mxu0 0.0
      %685 = vmatprep.subr.mxu0 0.0
      %686 = vmatpush1.msra.mxu0 0.0
      %687 = vmatprep.subr.mxu0 0.0
      %688 = vmatpush1.msra.mxu0 0.0
      %689 = vmatprep.subr.mxu0 0.0
      %690 = vmatpush1.msra.mxu0 0.0
      %691 = vmatprep.subr.mxu0 0.0
      %692 = vmatpush1.msra.mxu0 0.0
      %693 = vmatprep.subr.mxu0 0.0
      %694 = vmatpush1.msra.mxu0 0.0
      %695 = vmatprep.subr.mxu0 0.0
      %696 = vmatpush1.msra.mxu0 0.0
      %697 = vmatprep.subr.mxu0 0.0
      %698 = vmatpush1.msra.mxu0 0.0
      %699 = vmatprep.subr.mxu0 0.0
      %700 = vmatpush1.msra.mxu0 0.0
      %701 = vmatprep.subr.mxu0 0.0
      %702 = vmatpush1.msra.mxu0 0.0
      %703 = vmatprep.subr.mxu0 0.0
      %704 = vmatpush1.msra.mxu0 0.0
      %705 = vmatprep.subr.mxu0 0.0
      %706 = vmatpush1.msra.mxu0 0.0
      %707 = vmatprep.subr.mxu0 0.0
      %708 = vmatpush1.msra.mxu0 0.0
      %709 = vmatprep.subr.mxu0 %v240
      %710 = vmatpush1.msra.mxu0 %v239
      %711 = vmatprep.subr.mxu0 0.0
      %712 = vmatpush2.msra.mxu0 0.0
      %713 = vmatprep.subr.mxu0 0.0
      %714 = vmatpush2.msra.mxu0 0.0
      %715 = vmatprep.subr.mxu0 0.0
      %716 = vmatpush2.msra.mxu0 0.0
      %717 = vmatprep.subr.mxu0 0.0
      %718 = vmatpush2.msra.mxu0 0.0
      %719 = vmatprep.subr.mxu0 0.0
      %720 = vmatpush2.msra.mxu0 0.0
      %721 = vmatprep.subr.mxu0 0.0
      %722 = vmatpush2.msra.mxu0 0.0
      %723 = vmatprep.subr.mxu0 0.0
      %724 = vmatpush2.msra.mxu0 0.0
      %725 = vmatprep.subr.mxu0 0.0
      %726 = vmatpush2.msra.mxu0 0.0
      %727 = vmatprep.subr.mxu0 0.0
      %728 = vmatpush2.msra.mxu0 0.0
      %729 = vmatprep.subr.mxu0 0.0
      %730 = vmatpush2.msra.mxu0 0.0
      %731 = vmatprep.subr.mxu0 0.0
      %732 = vmatpush2.msra.mxu0 0.0
      %733 = vmatprep.subr.mxu0 0.0
      %734 = vmatpush2.msra.mxu0 0.0
      %735 = vmatprep.subr.mxu0 0.0
      %736 = vmatpush2.msra.mxu0 0.0
      %737 = vmatprep.subr.mxu0 0.0
      %738 = vmatpush2.msra.mxu0 0.0
      %739 = vmatprep.subr.mxu0 0.0
      %740 = vmatpush2.msra.mxu0 0.0
      %741 = vmatprep.subr.mxu0 0.0
      %742 = vmatpush2.msra.mxu0 0.0
      %743 = vmatprep.mubr.f32.mxu0 0.0
      %744 = vmatmul.mubr.f32.gmra.mxu0 %v561
      %v745 = vpop.f32.mrf.mxu0
      %v746 = vadd.f32 %v525, %v745
      %v747 = vpop.f32.mrf.mxu0
      %v748 = vadd.f32 %v527, %v747
      %749 = vmatprep.mubr.f32.mxu0 0.0
      %750 = vmatmul.mubr.f32.gmra.mxu0 %v564
      %v751 = vpop.f32.mrf.mxu0
      %v752 = vadd.f32 %v531, %v751
      %v753 = vpop.f32.mrf.mxu0
      %v754 = vadd.f32 %v533, %v753
      %755 = vmatprep.mubr.f32.mxu0 0.0
      %756 = vmatmul.mubr.f32.gmra.mxu0 %v567
      %v757 = vpop.f32.mrf.mxu0
      %v758 = vadd.f32 %v537, %v757
      %v759 = vpop.f32.mrf.mxu0
      %v760 = vadd.f32 %v539, %v759
      %761 = vmatprep.mubr.f32.mxu0 0.0
      %762 = vmatmul.mubr.f32.gmra.mxu0 %v570
      %v763 = vpop.f32.mrf.mxu0
      %v764 = vadd.f32 %v543, %v763
      %v765 = vpop.f32.mrf.mxu0
      %v766 = vadd.f32 %v545, %v765
      %767 = vmatprep.mubr.f32.mxu0 0.0
      %768 = vmatmul.mubr.f32.gmra.mxu0 %v573
      %v769 = vpop.f32.mrf.mxu0
      %v770 = vadd.f32 %v549, %v769
      %v771 = vpop.f32.mrf.mxu0
      %v772 = vadd.f32 %v551, %v771
      %773 = vmatprep.mubr.f32.mxu0 0.0
      %774 = vmatmul.mubr.f32.gmra.mxu0 %v576
      %v775 = vpop.f32.mrf.mxu0
      %v776 = vadd.f32 %v555, %v775
      %v777 = vpop.f32.mrf.mxu0
      %v778 = vadd.f32 %v557, %v777
      %779 = vdwg.mxu0
      %vm780 = vcmp.gt.f32.partialorder %v645, 0.0
      %vm781 = vcmp.gt.f32.partialorder %v647, 0.0
      %vm782 = vcmp.gt.f32.partialorder %v746, 0.0
      %vm783 = vcmp.gt.f32.partialorder %v748, 0.0
      %vm784 = vcmp.gt.f32.partialorder %v651, 0.0
      %vm785 = vcmp.gt.f32.partialorder %v653, 0.0
      %vm786 = vcmp.gt.f32.partialorder %v752, 0.0
      %vm787 = vcmp.gt.f32.partialorder %v754, 0.0
      %vm788 = vcmp.gt.f32.partialorder %v657, 0.0
      %vm789 = vcmp.gt.f32.partialorder %v659, 0.0
      %vm790 = vcmp.gt.f32.partialorder %v758, 0.0
      %vm791 = vcmp.gt.f32.partialorder %v760, 0.0
      %vm792 = vcmp.gt.f32.partialorder %v663, 0.0
      %vm793 = vcmp.gt.f32.partialorder %v665, 0.0
      %vm794 = vcmp.gt.f32.partialorder %v764, 0.0
      %vm795 = vcmp.gt.f32.partialorder %v766, 0.0
      %vm796 = vcmp.gt.f32.partialorder %v669, 0.0
      %vm797 = vcmp.gt.f32.partialorder %v671, 0.0
      %vm798 = vcmp.gt.f32.partialorder %v770, 0.0
      %vm799 = vcmp.gt.f32.partialorder %v772, 0.0
      %vm800 = vcmp.gt.f32.partialorder %v675, 0.0
      %vm801 = vcmp.gt.f32.partialorder %v677, 0.0
      %vm802 = vcmp.gt.f32.partialorder %v776, 0.0
      %vm803 = vcmp.gt.f32.partialorder %v778, 0.0
      %v804 = vmul.f32 %v645, 0.1
      %v805 = vmul.f32 %v647, 0.1
      %v806 = vmul.f32 %v746, 0.1
      %v807 = vmul.f32 %v748, 0.1
      %v808 = vmul.f32 %v651, 0.1
      %v809 = vmul.f32 %v653, 0.1
      %v810 = vmul.f32 %v752, 0.1
      %v811 = vmul.f32 %v754, 0.1
      %v812 = vmul.f32 %v657, 0.1
      %v813 = vmul.f32 %v659, 0.1
      %v814 = vmul.f32 %v758, 0.1
      %v815 = vmul.f32 %v760, 0.1
      %v816 = vmul.f32 %v663, 0.1
      %v817 = vmul.f32 %v665, 0.1
      %v818 = vmul.f32 %v764, 0.1
      %v819 = vmul.f32 %v766, 0.1
      %v820 = vmul.f32 %v669, 0.1
      %v821 = vmul.f32 %v671, 0.1
      %v822 = vmul.f32 %v770, 0.1
      %v823 = vmul.f32 %v772, 0.1
      %v824 = vmul.f32 %v675, 0.1
      %v825 = vmul.f32 %v677, 0.1
      %v826 = vmul.f32 %v776, 0.1
      %v827 = vmul.f32 %v778, 0.1
      %v828 = vsel %vm780, %v645, %v804
      %v829 = vsel %vm781, %v647, %v805
      %v830 = vsel %vm782, %v746, %v806
      %v831 = vsel %vm783, %v748, %v807
      %v832 = vsel %vm784, %v651, %v808
      %v833 = vsel %vm785, %v653, %v809
      %v834 = vsel %vm786, %v752, %v810
      %v835 = vsel %vm787, %v754, %v811
      %v836 = vsel %vm788, %v657, %v812
      %v837 = vsel %vm789, %v659, %v813
      %v838 = vsel %vm790, %v758, %v814
      %v839 = vsel %vm791, %v760, %v815
      %v840 = vsel %vm792, %v663, %v816
      %v841 = vsel %vm793, %v665, %v817
      %v842 = vsel %vm794, %v764, %v818
      %v843 = vsel %vm795, %v766, %v819
      %v844 = vsel %vm796, %v669, %v820
      %v845 = vsel %vm797, %v671, %v821
      %v846 = vsel %vm798, %v770, %v822
      %v847 = vsel %vm799, %v772, %v823
      %v848 = vsel %vm800, %v675, %v824
      %v849 = vsel %vm801, %v677, %v825
      %v850 = vsel %vm802, %v776, %v826
      %v851 = vsel %vm803, %v778, %v827
      %852 = vst [vmem:[%s235] sm:$0xff] %v828
      %853 = vst [vmem:[%s235 + $0x8] sm:$0xff] %v829
      %854 = vst [vmem:[%s235 + $0x10] sm:$0xff] %v830
      %855 = vst [vmem:[%s235 + $0x18] sm:$0xff] %v831
      %856 = vst [vmem:[%s235 + $0x20] sm:$0xff] %v832
      %857 = vst [vmem:[%s235 + $0x28] sm:$0xff] %v833
      %858 = vst [vmem:[%s235 + $0x30] sm:$0xff] %v834
      %859 = vst [vmem:[%s235 + $0x38] sm:$0xff] %v835
      %860 = vst [vmem:[%s235 + $0x40] sm:$0xff] %v836
      %861 = vst [vmem:[%s235 + $0x48] sm:$0xff] %v837
      %862 = vst [vmem:[%s235 + $0x50] sm:$0xff] %v838
      %863 = vst [vmem:[%s235 + $0x58] sm:$0xff] %v839
      %864 = vst [vmem:[%s235 + $0x60] sm:$0xff] %v840
      %865 = vst [vmem:[%s235 + $0x68] sm:$0xff] %v841
      %866 = vst [vmem:[%s235 + $0x70] sm:$0xff] %v842
      %867 = vst [vmem:[%s235 + $0x78] sm:$0xff] %v843
      %868 = vst [vmem:[%s235 + $0x80] sm:$0xff] %v844
      %869 = vst [vmem:[%s235 + $0x88] sm:$0xff] %v845
      %870 = vst [vmem:[%s235 + $0x90] sm:$0xff] %v846
      %871 = vst [vmem:[%s235 + $0x98] sm:$0xff] %v847
      %872 = vst [vmem:[%s235 + $0xa0] sm:$0xff] %v848
      %873 = vst [vmem:[%s235 + $0xa8] sm:$0xff] %v849
      %874 = vst [vmem:[%s235 + $0xb0] sm:$0xff] %v850
      %875 = vst [vmem:[%s235 + $0xb8] sm:$0xff] %v851
      %s876 = smul.u32 4, %s20
      %p877 = scmp.lt.s32.totalorder %s19, 1
      %s878 = scalar_select %p877, %s19, 1
      %p879 = scmp.lt.s32.totalorder %s876, 3
      %s880 = scalar_select %p879, %s876, 3
      %s881 = smul.addr %s878, 24
      %s882 = sadd.s32 %s880, %s881
      %s883 = smul.addr %s882, 8
      %s884 = scalar_lea.vmem %s4, %s883
      // Predicated region
      $region37: #{calibrated_backprojection_block.3} parent=35 // pred_check
        %p885 = pneg %p138
      $region38: #{calibrated_backprojection_block.3} parent=35 // pred_check_branch
        %887 = sbr.rel (%p885) target = $region40
      $region39: #{calibrated_backprojection_block.3} parent=35 // pred_region
        %s888 = smul.u32 4, %s20
      $region40: #{calibrated_backprojection_block.3} parent=35 // pred_fallthru
        _
    $region36: #{calibrated_backprojection_block.3} parent=5 // pred_fallthru
      _
    %p889 = scmp.le.s32.totalorder 2, %s10
    // Predicated region
    $region41: #{calibrated_backprojection_block.3} parent=5 // pred_check
      %p890 = pneg %p889
    $region42: #{calibrated_backprojection_block.3} parent=5 // pred_check_branch
      %892 = sbr.rel (%p890) target = $region44
    $region43: #{calibrated_backprojection_block.3} parent=5 // pred_region
      %s893 = ssub.s32 %s10, 2
      // Predicated region
      $region45: #{calibrated_backprojection_block.3} parent=43 // pred_check
        %p894 = pneg %p144
      $region46: #{calibrated_backprojection_block.3} parent=43 // pred_check_branch
        %896 = sbr.rel (%p894) target = $region48
      $region47: #{calibrated_backprojection_block.3} parent=43 // pred_region
        %s897 = smul.u32 4, %s22
        %p898 = scmp.lt.s32.totalorder %s21, 1
        %s899 = scalar_select %p898, %s21, 1
        %p900 = scmp.lt.s32.totalorder %s897, 3
        %s901 = scalar_select %p900, %s897, 3
        %s902 = smul.addr %s899, 24
        %s903 = sadd.s32 %s901, %s902
        %s904 = smul.addr %s903, 8
        %s905 = scalar_lea.vmem %s4, %s904
      $region48: #{calibrated_backprojection_block.3} parent=43 // pred_fallthru
        _
    $region44: #{calibrated_backprojection_block.3} parent=5 // pred_fallthru
      _
  $region6: #{calibrated_backprojection_block.3} parent=0 // loop_footer
    %s14 = sadd.s32 1, %s10
  $region7: #{calibrated_backprojection_block.3} parent=0 // loop_footer_branch
    %9 = sbr.rel target = $region3
  $region8: #{calibrated_backprojection_block.3} parent=0 // loop_exit
    _

// kernel: calibrated_backprojection_block.2
$region0: #{calibrated_backprojection_block.2}
  #allocation0 [shape = 'u32[]', space=smem, size = 0x4, offset = 0x4, fixed_abs, tag = 'smem constant byte address 0x4 - core index']
  #allocation1 [shape = 'u32[144,128]{1,0:T(1,128)}', space=vmem, size = 0x12000, scoped, tag = 'internal scratch']
  %s0 = inlined_call_operand.vmem [shape: f32[2,9,8,64], index: 0, kind: input, shape index: {}, may-alias: {0,1}]
  %s1 = inlined_call_operand.vmem [shape: f32[2,9,8,64], index: 1, kind: input, shape index: {}, may-alias: {0,1}]
  %s2 = inlined_call_operand.vmem [shape: f32[128,64], index: 2, kind: input, shape index: {}]
  %s3 = inlined_call_operand.vmem [shape: f32[2,48,64], index: 3, kind: output, shape index: {0}]
  %s4 = inlined_call_operand.vmem [shape: f32[2,16,64], index: 4, kind: output, shape index: {1}]
  %5 = xla_tuple %s3, %s4
  %s6 = sld [smem:[#allocation0]]
  $region53: #{calibrated_backprojection_block.2} parent=0
    _
  %s8 = ssub.s32 1, %s6
  %s9 = scalar_select 0, %s8, %s6
  loop: start=0, step=1, limit=4
  $region2: #{calibrated_backprojection_block.2} parent=0 // loop_pre_header
    _
  $region3: #{calibrated_backprojection_block.2} parent=0 // loop_header
    %s11 = sphi 0, %s15
    %p12 = scmp.ge.s32.totalorder %s11, 4
    %s18 = sphi 0, %s30
    %s19 = sphi 0, %s26
    %s20 = sphi 0, %s18
    %s21 = sphi 0, %s19
    %s22 = sphi 0, %s20
    %s23 = sphi 0, %s21
    %s35 = sphi 0, %s37
    %s38 = sphi 0, %s35
    %s39 = sphi 0, %s38
    %s55 = sphi 0, %s39
    %s67 = sphi 0, %s69
    %s70 = sphi 0, %s67
    %s71 = sphi 0, %s70
    %s87 = sphi 0, %s71
    %s91 = sphi 0, %s91
    %s93 = sphi 0, %s91
    %s94 = sphi 0, %s93
    %s108 = sphi 0, %s94
    %s116 = sphi 0, %s118
    %s119 = sphi 0, %s116
    %s120 = sphi 0, %s119
    %s136 = sphi 0, %s120
    %s144 = sphi 0, %s146
    %s147 = sphi 0, %s144
    %s148 = sphi 0, %s147
    %s164 = sphi 0, %s148
  $region4: #{calibrated_backprojection_block.2} parent=0 // loop_header_branch
    %14 = sbr.rel (%p12) target = $region8
  $region5: #{calibrated_backprojection_block.2} parent=0 // loop_body
    %s16 = ssub.s32 %s11, 1
    %s17 = ssub.s32 %s11, 2
    %s24 = sadd.s32 1, %s19
    %p25 = scmp.ge.s32.totalorder %s24, 1
    %s26 = scalar_select %p25, 0, %s24
    %s27 = sadd.s32 1, %s18
    %s28 = scalar_select %p25, %s27, %s18
    %p29 = scmp.ge.s32.totalorder %s28, 2
    %s30 = scalar_select %p29, 0, %s28
    %s31 = ssub.s32 %s18, %s30
    %s32 = ssub.s32 %s19, %s26
    %s33 = sor.u32 %s31, %s32
    %p34 = scmp.eq.s32.totalorder %s33, 0
    %s36 = sadd.s32 %s35, 1
    %s37 = scalar_select %p34, %s35, %s36
    %p40 = pneg %p34
    %p41 = scmp.eq.s32.totalorder %s11, 1
    %p42 = por %p40, %p41
    %p43 = scmp.ne.s32.totalorder %s35, %s38
    %p44 = scmp.eq.s32.totalorder %s11, 0
    %p45 = por %p43, %p44
    %p46 = scmp.ne.s32.totalorder %s35, %s38
    %p47 = scmp.eq.s32.totalorder %s16, 1
    %p48 = por %p46, %p47
    %p49 = scmp.ne.s32.totalorder %s38, %s39
    %p50 = scmp.eq.s32.totalorder %s16, 0
    %p51 = por %p49, %p50
    %p52 = scmp.ne.s32.totalorder %s38, %s39
    %p53 = scmp.eq.s32.totalorder %s17, 1
    %p54 = por %p52, %p53
    %p56 = scmp.ne.s32.totalorder %s39, %s55
    %p57 = scmp.eq.s32.totalorder %s17, 0
    %p58 = por %p56, %p57
    %s59 = sadd.s32 %s19, 1
    %s60 = smul.u32 %s59, 8
    %s61 = sadd.s32 %s26, 1
    %s62 = smul.u32 %s61, 8
    %s63 = ssub.s32 %s18, %s30
    %s64 = ssub.s32 %s60, %s62
    %s65 = sor.u32 %s63, %s64
    %p66 = scmp.eq.s32.totalorder %s65, 0
    %s68 = sadd.s32 %s67, 1
    %s69 = scalar_select %p66, %s67, %s68
    %p72 = pneg %p66
    %p73 = scmp.eq.s32.totalorder %s11, 1
    %p74 = por %p72, %p73
    %p75 = scmp.ne.s32.totalorder %s67, %s70
    %p76 = scmp.eq.s32.totalorder %s11, 0
    %p77 = por %p75, %p76
    %p78 = scmp.ne.s32.totalorder %s67, %s70
    %p79 = scmp.eq.s32.totalorder %s16, 1
    %p80 = por %p78, %p79
    %p81 = scmp.ne.s32.totalorder %s70, %s71
    %p82 = scmp.eq.s32.totalorder %s16, 0
    %p83 = por %p81, %p82
    %p84 = scmp.ne.s32.totalorder %s70, %s71
    %p85 = scmp.eq.s32.totalorder %s17, 1
    %p86 = por %p84, %p85
    %p88 = scmp.ne.s32.totalorder %s71, %s87
    %p89 = scmp.eq.s32.totalorder %s17, 0
    %p90 = por %p88, %p89
    %s92 = sadd.s32 %s91, 1
    %p95 = scmp.eq.s32.totalorder %s11, 1
    %p96 = scmp.ne.s32.totalorder %s91, %s93
    %p97 = scmp.eq.s32.totalorder %s11, 0
    %p98 = por %p96, %p97
    %p99 = scmp.ne.s32.totalorder %s91, %s93
    %p100 = scmp.eq.s32.totalorder %s16, 1
    %p101 = por %p99, %p100
    %p102 = scmp.ne.s32.totalorder %s93, %s94
    %p103 = scmp.eq.s32.totalorder %s16, 0
    %p104 = por %p102, %p103
    %p105 = scmp.ne.s32.totalorder %s93, %s94
    %p106 = scmp.eq.s32.totalorder %s17, 1
    %p107 = por %p105, %p106
    %p109 = scmp.ne.s32.totalorder %s94, %s108
    %p110 = scmp.eq.s32.totalorder %s17, 0
    %p111 = por %p109, %p110
    %s112 = ssub.s32 %s18, %s30
    %s113 = ssub.s32 %s19, %s26
    %s114 = sor.u32 %s112, %s113
    %p115 = scmp.eq.s32.totalorder %s114, 0
    %s117 = sadd.s32 %s116, 1
    %s118 = scalar_select %p115, %s116, %s117
    %p121 = pneg %p115
    %p122 = scmp.eq.s32.totalorder %s11, 1
    %p123 = por %p121, %p122
    %p124 = scmp.ne.s32.totalorder %s116, %s119
    %p125 = scmp.eq.s32.totalorder %s11, 0
    %p126 = por %p124, %p125
    %p127 = scmp.ne.s32.totalorder %s116, %s119
    %p128 = scmp.eq.s32.totalorder %s16, 1
    %p129 = por %p127, %p128
    %p130 = scmp.ne.s32.totalorder %s119, %s120
    %p131 = scmp.eq.s32.totalorder %s16, 0
    %p132 = por %p130, %p131
    %p133 = scmp.ne.s32.totalorder %s119, %s120
    %p134 = scmp.eq.s32.totalorder %s17, 1
    %p135 = por %p133, %p134
    %p137 = scmp.ne.s32.totalorder %s120, %s136
    %p138 = scmp.eq.s32.totalorder %s17, 0
    %p139 = por %p137, %p138
    %s140 = ssub.s32 %s18, %s30
    %s141 = ssub.s32 %s19, %s26
    %s142 = sor.u32 %s140, %s141
    %p143 = scmp.eq.s32.totalorder %s142, 0
    %s145 = sadd.s32 %s144, 1
    %s146 = scalar_select %p143, %s144, %s145
    %p149 = pneg %p143
    %p150 = scmp.eq.s32.totalorder %s11, 1
    %p151 = por %p149, %p150
    %p152 = scmp.ne.s32.totalorder %s144, %s147
    %p153 = scmp.eq.s32.totalorder %s11, 0
    %p154 = por %p152, %p153
    %p155 = scmp.ne.s32.totalorder %s144, %s147
    %p156 = scmp.eq.s32.totalorder %s16, 1
    %p157 = por %p155, %p156
    %p158 = scmp.ne.s32.totalorder %s147, %s148
    %p159 = scmp.eq.s32.totalorder %s16, 0
    %p160 = por %p158, %p159
    %p161 = scmp.ne.s32.totalorder %s147, %s148
    %p162 = scmp.eq.s32.totalorder %s17, 1
    %p163 = por %p161, %p162
    %p165 = scmp.ne.s32.totalorder %s148, %s164
    %p166 = scmp.eq.s32.totalorder %s17, 0
    %p167 = por %p165, %p166
    %p168 = scmp.le.s32.totalorder 1, %s11
    %p169 = scmp.lt.s32.totalorder %s11, 3
    %p170 = pnand %p168, %p169
    %p171 = pneg %p170
    // Predicated region
    $region9: #{calibrated_backprojection_block.2} parent=5 // pred_check
      _
    $region10: #{calibrated_backprojection_block.2} parent=5 // pred_check_branch
      %173 = sbr.rel (%p170) target = $region12
    $region11: #{calibrated_backprojection_block.2} parent=5 // pred_region
      %s174 = ssub.s32 %s11, 1
      // Predicated region
      $region13: #{calibrated_backprojection_block.2} parent=11 // pred_check
        %p175 = pneg %p104
      $region14: #{calibrated_backprojection_block.2} parent=11 // pred_check_branch
        %177 = sbr.rel (%p175) target = $region16
      $region15: #{calibrated_backprojection_block.2} parent=11 // pred_region
        _
      $region16: #{calibrated_backprojection_block.2} parent=11 // pred_fallthru
        _
    $region12: #{calibrated_backprojection_block.2} parent=5 // pred_fallthru
      _
    %p178 = scmp.lt.s32.totalorder %s11, 2
    // Predicated region
    $region17: #{calibrated_backprojection_block.2} parent=5 // pred_check
      %p179 = pneg %p178
    $region18: #{calibrated_backprojection_block.2} parent=5 // pred_check_branch
      %181 = sbr.rel (%p179) target = $region20
    $region19: #{calibrated_backprojection_block.2} parent=5 // pred_region
      // Predicated region
      $region21: #{calibrated_backprojection_block.2} parent=19 // pred_check
        %p182 = pneg %p45
      $region22: #{calibrated_backprojection_block.2} parent=19 // pred_check_branch
        %184 = sbr.rel (%p182) target = $region24
      $region23: #{calibrated_backprojection_block.2} parent=19 // pred_region
        %s185 = smul.u32 8, %s19
        %s186 = ssub.s32 9, %s185
        %p187 = scmp.lt.s32.totalorder %s186, 8
        %s188 = scalar_select %p187, %s186, 8
        %s189 = smul.u32 128, %s188
        %p190 = scmp.lt.s32.totalorder %s18, 1
        %s191 = scalar_select %p190, %s18, 1
        %p192 = scmp.lt.s32.totalorder %s185, 8
        %s193 = scalar_select %p192, %s185, 8
        %s194 = smul.addr %s191, 9
        %s195 = sadd.s32 %s193, %s194
        %s196 = smul.addr %s195, 8
        %s197 = scalar_lea.vmem %s0, %s196
        %s198 = smul.u32 8, %s19
        %s199 = ssub.s32 9, %s198
        %p200 = scmp.lt.s32.totalorder %s199, 8
        %s201 = scalar_select %p200, %s199, 8
        %s202 = smul.u32 128, %s201
      $region24: #{calibrated_backprojection_block.2} parent=19 // pred_fallthru
        _
      // Predicated region
      $region25: #{calibrated_backprojection_block.2} parent=19 // pred_check
        %p203 = pneg %p77
      $region26: #{calibrated_backprojection_block.2} parent=19 // pred_check_branch
        %205 = sbr.rel (%p203) target = $region28
      $region27: #{calibrated_backprojection_block.2} parent=19 // pred_region
        %s206 = sadd.s32 %s19, 1
        %s207 = smul.u32 %s206, 8
        %p208 = scmp.lt.s32.totalorder %s18, 1
        %s209 = scalar_select %p208, %s18, 1
        %p210 = scmp.lt.s32.totalorder %s207, 8
        %s211 = scalar_select %p210, %s207, 8
        %s212 = smul.addr %s209, 9
        %s213 = sadd.s32 %s211, %s212
        %s214 = smul.addr %s213, 8
        %s215 = scalar_lea.vmem %s1, %s214
        %s216 = sadd.s32 %s19, 1
        %s217 = smul.u32 %s216, 8
      $region28: #{calibrated_backprojection_block.2} parent=19 // pred_fallthru
        _
    $region20: #{calibrated_backprojection_block.2} parent=5 // pred_fallthru
      _
    %p218 = scmp.le.s32.totalorder 1, %s11
    %p219 = scmp.lt.s32.totalorder %s11, 3
    %p220 = pnand %p218, %p219
    %p221 = pneg %p220
    // Predicated region
    $region29: #{calibrated_backprojection_block.2} parent=5 // pred_check
      _
    $region30: #{calibrated_backprojection_block.2} parent=5 // pred_check_branch
      %223 = sbr.rel (%p220) target = $region32
    $region31: #{calibrated_backprojection_block.2} parent=5 // pred_region
      %s224 = ssub.s32 %s11, 1
      %s225 = smul.u32 8, %s21
      %s226 = ssub.s32 9, %s225
      %p227 = scmp.lt.s32.totalorder %s226, 8
      %s228 = scalar_select %p227, %s226, 8
      %s229 = smul.u32 128, %s228
      %p230 = scmp.lt.s32.totalorder %s20, 1
      %s231 = scalar_select %p230, %s20, 1
      %p232 = scmp.lt.s32.totalorder %s225, 8
      %s233 = scalar_select %p232, %s225, 8
      %s234 = smul.addr %s231, 9
      %s235 = sadd.s32 %s233, %s234
      %s236 = smul.addr %s235, 8
      %s237 = scalar_lea.vmem %s0, %s236
      %p238 = pneg %p51
      %p239 = pneg %p48
      %s240 = sadd.s32 %s21, 1
      %s241 = smul.u32 %s240, 8
      %p242 = scmp.lt.s32.totalorder %s20, 1
      %s243 = scalar_select %p242, %s20, 1
      %p244 = scmp.lt.s32.totalorder %s241, 8
      %s245 = scalar_select %p244, %s241, 8
      %s246 = smul.addr %s243, 9
      %s247 = sadd.s32 %s245, %s246
      %s248 = smul.addr %s247, 8
      %s249 = scalar_lea.vmem %s1, %s248
      %p250 = pneg %p83
      %p251 = pneg %p80
      %p252 = pneg %p104
      %p253 = pneg %p101
      %p254 = pneg %p132
      %p255 = pneg %p129
      %p256 = scmp.lt.s32.totalorder %s20, 1
      %s257 = scalar_select %p256, %s20, 1
      %p258 = scmp.lt.s32.totalorder %s21, 0
      %s259 = scalar_select %p258, %s21, 0
      %s260 = smul.addr %s257, 6
      %s261 = sadd.s32 %s259, %s260
      %s262 = smul.addr %s261, 8
      %s263 = scalar_lea.vmem %s3, %s262
      %p264 = pneg %p160
      %p265 = pneg %p157
      %p266 = scmp.lt.s32.totalorder %s20, 1
      %s267 = scalar_select %p266, %s20, 1
      %p268 = scmp.lt.s32.totalorder %s21, 0
      %s269 = scalar_select %p268, %s21, 0
      %s270 = smul.addr %s267, 2
      %s271 = sadd.s32 %s269, %s270
      %s272 = smul.addr %s271, 8
      %s273 = scalar_lea.vmem %s4, %s272
      %s274 = smul.u32 8, %s21
      %s275 = ssub.s32 9, %s274
      %p276 = scmp.lt.s32.totalorder %s275, 8
      %s277 = scalar_select %p276, %s275, 8
      %s278 = smul.u32 128, %s277
      %p279 = scmp.lt.s32.totalorder %s20, 1
      %s280 = scalar_select %p279, %s20, 1
      %p281 = scmp.lt.s32.totalorder %s274, 8
      %s282 = scalar_select %p281, %s274, 8
      %s283 = smul.addr %s280, 9
      %s284 = sadd.s32 %s282, %s283
      %s285 = smul.addr %s284, 8
      %s286 = scalar_lea.vmem %s0, %s285
      %s287 = smul.u32 8, %s21
      %s288 = ssub.s32 9, %s287
      %p289 = scmp.lt.s32.totalorder %s288, 8
      %s290 = scalar_select %p289, %s288, 8
      %s291 = smul.u32 128, %s290
      %s292 = sadd.s32 %s21, 1
      %s293 = smul.u32 %s292, 8
      %p294 = scmp.lt.s32.totalorder %s20, 1
      %s295 = scalar_select %p294, %s20, 1
      %p296 = scmp.lt.s32.totalorder %s293, 8
      %s297 = scalar_select %p296, %s293, 8
      %s298 = smul.addr %s295, 9
      %s299 = sadd.s32 %s297, %s298
      %s300 = smul.addr %s299, 8
      %s301 = scalar_lea.vmem %s1, %s300
      %s302 = sadd.s32 %s21, 1
      %s303 = smul.u32 %s302, 8
      %p304 = scmp.lt.s32.totalorder %s20, 1
      %s305 = scalar_select %p304, %s20, 1
      %p306 = scmp.lt.s32.totalorder %s21, 0
      %s307 = scalar_select %p306, %s21, 0
      %s308 = smul.addr %s305, 6
      %s309 = sadd.s32 %s307, %s308
      %s310 = smul.addr %s309, 8
      %s311 = scalar_lea.vmem %s3, %s310
      %p312 = scmp.lt.s32.totalorder %s20, 1
      %s313 = scalar_select %p312, %s20, 1
      %p314 = scmp.lt.s32.totalorder %s21, 0
      %s315 = scalar_select %p314, %s21, 0
      %s316 = smul.addr %s313, 2
      %s317 = sadd.s32 %s315, %s316
      %s318 = smul.addr %s317, 8
      %s319 = scalar_lea.vmem %s4, %s318
      %v320 = vld [vmem:[%s286] sm:$0xff]
      %v321 = vld [vmem:[%s286 + $0x8] sm:$0xff]
      %v322 = vld [vmem:[%s286 + $0x10] sm:$0xff]
      %v323 = vld [vmem:[%s286 + $0x18] sm:$0xff]
      %v324 = vld [vmem:[%s286 + $0x20] sm:$0xff]
      %v325 = vld [vmem:[%s286 + $0x28] sm:$0xff]
      %v326 = vld [vmem:[%s286 + $0x30] sm:$0xff]
      %v327 = vld [vmem:[%s286 + $0x38] sm:$0xff]
      %v328 = vld [vmem:[%s301] sm:$0xff]
      %337 = vrot.lane.b32.xlu0 %v321, 64
      %v338 = vpop.permute.xlu0 %337
      %339 = vrot.lane.b32.xlu0 %v322, 64
      %v340 = vpop.permute.xlu0 %339
      %341 = vrot.lane.b32.xlu0 %v323, 64
      %v342 = vpop.permute.xlu0 %341
      %343 = vrot.lane.b32.xlu0 %v324, 64
      %v344 = vpop.permute.xlu0 %343
      %345 = vrot.lane.b32.xlu0 %v325, 64
      %v346 = vpop.permute.xlu0 %345
      %347 = vrot.lane.b32.xlu0 %v326, 64
      %v348 = vpop.permute.xlu0 %347
      %349 = vrot.lane.b32.xlu0 %v327, 64
      %v350 = vpop.permute.xlu0 %349
      %351 = vrot.lane.b32.xlu0 %v328, 64
      %v352 = vpop.permute.xlu0 %351
      %vm361 = vcmask 523264
      %v362 = vsel %vm361, %v320, %v338
      %v363 = vsel %vm361, %v321, %v340
      %v364 = vsel %vm361, %v322, %v342
      %v365 = vsel %vm361, %v323, %v344
      %v366 = vsel %vm361, %v324, %v346
      %v367 = vsel %vm361, %v325, %v348
      %v368 = vsel %vm361, %v326, %v350
      %v369 = vsel %vm361, %v327, %v352
      %v370 = vld [vmem:[%s2] sm:$0xff]
      %v371 = vld [vmem:[%s2 + $0x8] sm:$0xff]
      %v372 = vld [vmem:[%s2 + $0x10] sm:$0xff]
      %v373 = vld [vmem:[%s2 + $0x18] sm:$0xff]
      %v374 = vld [vmem:[%s2 + $0x20] sm:$0xff]
      %v375 = vld [vmem:[%s2 + $0x28] sm:$0xff]
      %v376 = vld [vmem:[%s2 + $0x30] sm:$0xff]
      %v377 = vld [vmem:[%s2 + $0x38] sm:$0xff]
      %v378 = vld [vmem:[%s2 + $0x40] sm:$0xff]
      %v379 = vld [vmem:[%s2 + $0x48] sm:$0xff]
      %v380 = vld [vmem:[%s2 + $0x50] sm:$0xff]
      %v381 = vld [vmem:[%s2 + $0x58] sm:$0xff]
      %v382 = vld [vmem:[%s2 + $0x60] sm:$0xff]
      %v383 = vld [vmem:[%s2 + $0x68] sm:$0xff]
      %v384 = vld [vmem:[%s2 + $0x70] sm:$0xff]
      %v385 = vld [vmem:[%s2 + $0x78] sm:$0xff]
      %386 = vmatprep.subr.mxu0 0.0
      %387 = vmatpush1.msra.mxu0 %v385
      %388 = vmatprep.subr.mxu0 0.0
      %389 = vmatpush1.msra.mxu0 %v384
      %390 = vmatprep.subr.mxu0 0.0
      %391 = vmatpush1.msra.mxu0 %v383
      %392 = vmatprep.subr.mxu0 0.0
      %393 = vmatpush1.msra.mxu0 %v382
      %394 = vmatprep.subr.mxu0 0.0
      %395 = vmatpush1.msra.mxu0 %v381
      %396 = vmatprep.subr.mxu0 0.0
      %397 = vmatpush1.msra.mxu0 %v380
      %398 = vmatprep.subr.mxu0 0.0
      %399 = vmatpush1.msra.mxu0 %v379
      %400 = vmatprep.subr.mxu0 0.0
      %401 = vmatpush1.msra.mxu0 %v378
      %402 = vmatprep.subr.mxu0 0.0
      %403 = vmatpush1.msra.mxu0 %v377
      %404 = vmatprep.subr.mxu0 0.0
      %405 = vmatpush1.msra.mxu0 %v376
      %406 = vmatprep.subr.mxu0 0.0
      %407 = vmatpush1.msra.mxu0 %v375
      %408 = vmatprep.subr.mxu0 0.0
      %409 = vmatpush1.msra.mxu0 %v374
      %410 = vmatprep.subr.mxu0 0.0
      %411 = vmatpush1.msra.mxu0 %v373
      %412 = vmatprep.subr.mxu0 0.0
      %413 = vmatpush1.msra.mxu0 %v372
      %414 = vmatprep.subr.mxu0 0.0
      %415 = vmatpush1.msra.mxu0 %v371
      %416 = vmatprep.subr.mxu0 0.0
      %417 = vmatpush1.msra.mxu0 %v370
      %418 = vmatprep.subr.mxu0 0.0
      %419 = vmatpush2.msra.mxu0 0.0
      %420 = vmatprep.subr.mxu0 0.0
      %421 = vmatpush2.msra.mxu0 0.0
      %422 = vmatprep.subr.mxu0 0.0
      %423 = vmatpush2.msra.mxu0 0.0
      %424 = vmatprep.subr.mxu0 0.0
      %425 = vmatpush2.msra.mxu0 0.0
      %426 = vmatprep.subr.mxu0 0.0
      %427 = vmatpush2.msra.mxu0 0.0
      %428 = vmatprep.subr.mxu0 0.0
      %429 = vmatpush2.msra.mxu0 0.0
      %430 = vmatprep.subr.mxu0 0.0
      %431 = vmatpush2.msra.mxu0 0.0
      %432 = vmatprep.subr.mxu0 0.0
      %433 = vmatpush2.msra.mxu0 0.0
      %434 = vmatprep.subr.mxu0 0.0
      %435 = vmatpush2.msra.mxu0 0.0
      %436 = vmatprep.subr.mxu0 0.0
      %437 = vmatpush2.msra.mxu0 0.0
      %438 = vmatprep.subr.mxu0 0.0
      %439 = vmatpush2.msra.mxu0 0.0
      %440 = vmatprep.subr.mxu0 0.0
      %441 = vmatpush2.msra.mxu0 0.0
      %442 = vmatprep.subr.mxu0 0.0
      %443 = vmatpush2.msra.mxu0 0.0
      %444 = vmatprep.subr.mxu0 0.0
      %445 = vmatpush2.msra.mxu0 0.0
      %446 = vmatprep.subr.mxu0 0.0
      %447 = vmatpush2.msra.mxu0 0.0
      %448 = vmatprep.subr.mxu0 0.0
      %449 = vmatpush2.msra.mxu0 0.0
      %450 = vmatprep.mubr.f32.mxu0 0.0
      %451 = vmatmul.mubr.f32.gmra.mxu0 %v362
      %v452 = vpop.f32.mrf.mxu0
      %v453 = vadd.f32 0.0, %v452
      %v454 = vpop.f32.mrf.mxu0
      %455 = vmatprep.mubr.f32.mxu0 0.0
      %456 = vmatmul.mubr.f32.gmra.mxu0 %v363
      %v457 = vpop.f32.mrf.mxu0
      %v458 = vadd.f32 0.0, %v457
      %v459 = vpop.f32.mrf.mxu0
      %460 = vmatprep.mubr.f32.mxu0 0.0
      %461 = vmatmul.mubr.f32.gmra.mxu0 %v364
      %v462 = vpop.f32.mrf.mxu0
      %v463 = vadd.f32 0.0, %v462
      %v464 = vpop.f32.mrf.mxu0
      %465 = vmatprep.mubr.f32.mxu0 0.0
      %466 = vmatmul.mubr.f32.gmra.mxu0 %v365
      %v467 = vpop.f32.mrf.mxu0
      %v468 = vadd.f32 0.0, %v467
      %v469 = vpop.f32.mrf.mxu0
      %470 = vmatprep.mubr.f32.mxu0 0.0
      %471 = vmatmul.mubr.f32.gmra.mxu0 %v366
      %v472 = vpop.f32.mrf.mxu0
      %v473 = vadd.f32 0.0, %v472
      %v474 = vpop.f32.mrf.mxu0
      %475 = vmatprep.mubr.f32.mxu0 0.0
      %476 = vmatmul.mubr.f32.gmra.mxu0 %v367
      %v477 = vpop.f32.mrf.mxu0
      %v478 = vadd.f32 0.0, %v477
      %v479 = vpop.f32.mrf.mxu0
      %480 = vmatprep.mubr.f32.mxu0 0.0
      %481 = vmatmul.mubr.f32.gmra.mxu0 %v368
      %v482 = vpop.f32.mrf.mxu0
      %v483 = vadd.f32 0.0, %v482
      %v484 = vpop.f32.mrf.mxu0
      %485 = vmatprep.mubr.f32.mxu0 0.0
      %486 = vmatmul.mubr.f32.gmra.mxu0 %v369
      %v487 = vpop.f32.mrf.mxu0
      %v488 = vadd.f32 0.0, %v487
      %v489 = vpop.f32.mrf.mxu0
      %490 = vdwg.mxu0
      %vm491 = vcmp.gt.f32.partialorder %v453, 0.0
      %vm492 = vcmp.gt.f32.partialorder %v458, 0.0
      %vm493 = vcmp.gt.f32.partialorder %v463, 0.0
      %vm494 = vcmp.gt.f32.partialorder %v468, 0.0
      %vm495 = vcmp.gt.f32.partialorder %v473, 0.0
      %vm496 = vcmp.gt.f32.partialorder %v478, 0.0
      %vm497 = vcmp.gt.f32.partialorder %v483, 0.0
      %vm498 = vcmp.gt.f32.partialorder %v488, 0.0
      %v499 = vmul.f32 %v453, 0.1
      %v500 = vmul.f32 %v458, 0.1
      %v501 = vmul.f32 %v463, 0.1
      %v502 = vmul.f32 %v468, 0.1
      %v503 = vmul.f32 %v473, 0.1
      %v504 = vmul.f32 %v478, 0.1
      %v505 = vmul.f32 %v483, 0.1
      %v506 = vmul.f32 %v488, 0.1
      %v507 = vsel %vm491, %v453, %v499
      %v508 = vsel %vm492, %v458, %v500
      %v509 = vsel %vm493, %v463, %v501
      %v510 = vsel %vm494, %v468, %v502
      %v511 = vsel %vm495, %v473, %v503
      %v512 = vsel %vm496, %v478, %v504
      %v513 = vsel %vm497, %v483, %v505
      %v514 = vsel %vm498, %v488, %v506
      %515 = vxpose.xlu0.b32.start [1/16] %v507, 128
      %516 = vxpose.xlu0.b32.cont [2/16] %v508, 128
      %517 = vxpose.xlu0.b32.cont [3/16] %v509, 128
      %518 = vxpose.xlu0.b32.cont [4/16] %v510, 128
      %519 = vxpose.xlu0.b32.cont [5/16] %v511, 128
      %520 = vxpose.xlu0.b32.cont [6/16] %v512, 128
      %521 = vxpose.xlu0.b32.cont [7/16] %v513, 128
      %522 = vxpose.xlu0.b32.cont [8/16] %v514, 128
      %523 = vxpose.xlu0.b32.cont [9/16] 0.0, 128
      %524 = vxpose.xlu0.b32.cont [10/16] 0.0, 128
      %525 = vxpose.xlu0.b32.cont [11/16] 0.0, 128
      %526 = vxpose.xlu0.b32.cont [12/16] 0.0, 128
      %527 = vxpose.xlu0.b32.cont [13/16] 0.0, 128
      %528 = vxpose.xlu0.b32.cont [14/16] 0.0, 128
      %529 = vxpose.xlu0.b32.cont [15/16] 0.0, 128
      %530 = vxpose.xlu0.b32.end [16/16] 0.0, 128
      %v531 = vpop.trf.xlu0
      %v532 = vpop.trf.xlu0
      %v533 = vpop.trf.xlu0
      %v534 = vpop.trf.xlu0
      %v535 = vpop.trf.xlu0
      %v536 = vpop.trf.xlu0
      %v537 = vpop.trf.xlu0
      %v538 = vpop.trf.xlu0
      %v539 = vpop.trf.xlu0
      %v540 = vpop.trf.xlu0
      %v541 = vpop.trf.xlu0
      %v542 = vpop.trf.xlu0
      %v543 = vpop.trf.xlu0
      %v544 = vpop.trf.xlu0
      %v545 = vpop.trf.xlu0
      %v546 = vpop.trf.xlu0
      %547 = vst.msk [vmem:[%s311] sm:$0xff] %vm361, %v531
      %548 = vst.msk [vmem:[%s311 + $0x8] sm:$0xff] %vm361, %v532
      %549 = vst.msk [vmem:[%s311 + $0x10] sm:$0xff] %vm361, %v533
      %550 = vst.msk [vmem:[%s311 + $0x18] sm:$0xff] %vm361, %v534
      %551 = vst.msk [vmem:[%s311 + $0x20] sm:$0xff] %vm361, %v535
      %552 = vst.msk [vmem:[%s311 + $0x28] sm:$0xff] %vm361, %v536
      %553 = vst.msk [vmem:[%s319] sm:$0xff] %vm361, %v537
      %554 = vst.msk [vmem:[%s319 + $0x8] sm:$0xff] %vm361, %v538
      %p555 = scmp.lt.s32.totalorder %s20, 1
      %s556 = scalar_select %p555, %s20, 1
      %p557 = scmp.lt.s32.totalorder %s21, 0
      %s558 = scalar_select %p557, %s21, 0
      %s559 = smul.addr %s556, 6
      %s560 = sadd.s32 %s558, %s559
      %s561 = smul.addr %s560, 8
      %s562 = scalar_lea.vmem %s3, %s561
      %p563 = scmp.lt.s32.totalorder %s20, 1
      %s564 = scalar_select %p563, %s20, 1
      %p565 = scmp.lt.s32.totalorder %s21, 0
      %s566 = scalar_select %p565, %s21, 0
      %s567 = smul.addr %s564, 2
      %s568 = sadd.s32 %s566, %s567
      %s569 = smul.addr %s568, 8
      %s570 = scalar_lea.vmem %s4, %s569
      // Predicated region
      $region33: #{calibrated_backprojection_block.2} parent=31 // pred_check
        %p571 = pneg %p129
      $region34: #{calibrated_backprojection_block.2} parent=31 // pred_check_branch
        %573 = sbr.rel (%p571) target = $region36
      $region35: #{calibrated_backprojection_block.2} parent=31 // pred_region
        _
      $region36: #{calibrated_backprojection_block.2} parent=31 // pred_fallthru
        _
      // Predicated region
      $region37: #{calibrated_backprojection_block.2} parent=31 // pred_check
        %p574 = pneg %p157
      $region38: #{calibrated_backprojection_block.2} parent=31 // pred_check_branch
        %576 = sbr.rel (%p574) target = $region40
      $region39: #{calibrated_backprojection_block.2} parent=31 // pred_region
        _
      $region40: #{calibrated_backprojection_block.2} parent=31 // pred_fallthru
        _
    $region32: #{calibrated_backprojection_block.2} parent=5 // pred_fallthru
      _
    %p577 = scmp.le.s32.totalorder 2, %s11
    // Predicated region
    $region41: #{calibrated_backprojection_block.2} parent=5 // pred_check
      %p578 = pneg %p577
    $region42: #{calibrated_backprojection_block.2} parent=5 // pred_check_branch
      %580 = sbr.rel (%p578) target = $region44
    $region43: #{calibrated_backprojection_block.2} parent=5 // pred_region
      %s581 = ssub.s32 %s11, 2
      // Predicated region
      $region45: #{calibrated_backprojection_block.2} parent=43 // pred_check
        %p582 = pneg %p135
      $region46: #{calibrated_backprojection_block.2} parent=43 // pred_check_branch
        %584 = sbr.rel (%p582) target = $region48
      $region47: #{calibrated_backprojection_block.2} parent=43 // pred_region
        %p585 = scmp.lt.s32.totalorder %s22, 1
        %s586 = scalar_select %p585, %s22, 1
        %p587 = scmp.lt.s32.totalorder %s23, 0
        %s588 = scalar_select %p587, %s23, 0
        %s589 = smul.addr %s586, 6
        %s590 = sadd.s32 %s588, %s589
        %s591 = smul.addr %s590, 8
        %s592 = scalar_lea.vmem %s3, %s591
      $region48: #{calibrated_backprojection_block.2} parent=43 // pred_fallthru
        _
      // Predicated region
      $region49: #{calibrated_backprojection_block.2} parent=43 // pred_check
        %p593 = pneg %p163
      $region50: #{calibrated_backprojection_block.2} parent=43 // pred_check_branch
        %595 = sbr.rel (%p593) target = $region52
      $region51: #{calibrated_backprojection_block.2} parent=43 // pred_region
        %p596 = scmp.lt.s32.totalorder %s22, 1
        %s597 = scalar_select %p596, %s22, 1
        %p598 = scmp.lt.s32.totalorder %s23, 0
        %s599 = scalar_select %p598, %s23, 0
        %s600 = smul.addr %s597, 2
        %s601 = sadd.s32 %s599, %s600
        %s602 = smul.addr %s601, 8
        %s603 = scalar_lea.vmem %s4, %s602
      $region52: #{calibrated_backprojection_block.2} parent=43 // pred_fallthru
        _
    $region44: #{calibrated_backprojection_block.2} parent=5 // pred_fallthru
      _
  $region6: #{calibrated_backprojection_block.2} parent=0 // loop_footer
    %s15 = sadd.s32 1, %s11
  $region7: #{calibrated_backprojection_block.2} parent=0 // loop_footer_branch
    %10 = sbr.rel target = $region3
  $region8: #{calibrated_backprojection_block.2} parent=0 // loop_exit
    _

</llo_original>
